<compile_context>
chip_gen: v7x
topology: tpu7x:2x2x1
jax: 0.10.0
libtpu: 0.0.40
codegen_flags: <defaults>
</compile_context>

<pallas_src>
import math

import jax
import jax.numpy as jnp
from jax import lax
from jax.experimental import pallas as pl
from jax.experimental.pallas import tpu as pltpu  # noqa: F401  (TPU backend)


# ----------------------------- config -------------------------------------
B = 2          # batch
C = 3          # image channels
H = W = 16     # spatial
P = 4          # patch size
N = (H // P) * (W // P)     # 16 tokens
PDIM = C * P * P            # 48 flattened patch dim
D = 32         # backbone embed dim == final_in_features
MLP = 4 * D    # transformer MLP hidden (128)
FC_DIM = 32    # FCLayer linear size
N_CLASSES = 8
LN_EPS = 1e-6
BN_EPS = 1e-5

# packed bias / LN / BN table: one (N_VROWS, VEC_W) f32 array, one row per vec
VEC_W = 128
(ROW_B_PE, ROW_LN1_G, ROW_LN1_B, ROW_B_Q, ROW_B_K, ROW_B_V, ROW_B_PROJ,
 ROW_LN2_G, ROW_LN2_B, ROW_B1, ROW_B2, ROW_B_FC, ROW_BN_G, ROW_BN_B,
 ROW_BN_M, ROW_BN_V, ROW_B_CLS) = range(17)
N_VROWS = 17


# --------------------------- kernel helpers --------------------------------
def _vrow(vec_ref, row, dim):
    # static slice of the packed vector table -> (1, dim), broadcasts over rows
    return vec_ref[row:row + 1, :dim]


def _layernorm(x, g, b):
    mu = jnp.mean(x, axis=-1, keepdims=True)
    var = jnp.mean((x - mu) ** 2, axis=-1, keepdims=True)
    return (x - mu) * lax.rsqrt(var + LN_EPS) * g + b


def _dot(a_f32, w_bf16):
    # bf16 MXU operands, f32 accumulation
    return jnp.dot(a_f32.astype(jnp.bfloat16), w_bf16,
                   preferred_element_type=jnp.float32)


# --------------------------- fused Pallas kernel ----------------------------
def mcsnet_fused_kernel(xp_ref, wpe_ref, pos_ref, wqkv_ref, wproj_ref,
                        w1_ref, w2_ref, wfc_ref, wcls_ref, vec_ref, o_ref):
    bf16 = jnp.bfloat16

    # ---- backbone: patch embed + positional embedding ----
    emb = _dot(xp_ref[...], wpe_ref[...]) + _vrow(vec_ref, ROW_B_PE, D)  # (B*N,D)
    pos = pos_ref[...]                                                   # (N, D)
    x = emb + jnp.concatenate([pos] * B, axis=0)                         # (B*N,D)

    # ---- transformer block (pre-LN, single head) ----
    h = _layernorm(x, _vrow(vec_ref, ROW_LN1_G, D), _vrow(vec_ref, ROW_LN1_B, D))
    hb = h.astype(bf16)
    q = jnp.dot(hb, wqkv_ref[0], preferred_element_type=jnp.float32) \
        + _vrow(vec_ref, ROW_B_Q, D)                                     # (B*N,D)
    k = jnp.dot(hb, wqkv_ref[1], preferred_element_type=jnp.float32) \
        + _vrow(vec_ref, ROW_B_K, D)
    v = jnp.dot(hb, wqkv_ref[2], preferred_element_type=jnp.float32) \
        + _vrow(vec_ref, ROW_B_V, D)

    scale = 1.0 / math.sqrt(D)
    attn_parts = []
    for b in range(B):                         # static unrolled loop (B == 2)
        sl = slice(b * N, (b + 1) * N)         # sublane-aligned static slices
        qb = q[sl].astype(bf16)
        kb = k[sl].astype(bf16)
        vb = v[sl].astype(bf16)
        # contract last dim of both operands: MXU consumes k transposed,
        # no explicit XLU transpose.
        scores = lax.dot_general(qb, kb, (((1,), (1,)), ((), ())),
                                 preferred_element_type=jnp.float32) * scale
        probs = jax.nn.softmax(scores, axis=-1)                          # f32
        attn_parts.append(jnp.dot(probs.astype(bf16), vb,
                                  preferred_element_type=jnp.float32))
    attn = jnp.concatenate(attn_parts, axis=0)                           # (B*N,D)
    attn = _dot(attn, wproj_ref[...]) + _vrow(vec_ref, ROW_B_PROJ, D)
    x = x + attn

    h2 = _layernorm(x, _vrow(vec_ref, ROW_LN2_G, D), _vrow(vec_ref, ROW_LN2_B, D))
    m = _dot(h2, w1_ref[...]) + _vrow(vec_ref, ROW_B1, MLP)              # (B*N,MLP)
    # TODO(synk): PyTorch nn.GELU defaults to exact erf; tanh approximation
    # used here (backbone is a stand-in for the unreproducible timm model).
    m = jax.nn.gelu(m, approximate=True)
    m = _dot(m, w2_ref[...]) + _vrow(vec_ref, ROW_B2, D)                 # (B*N,D)
    x = x + m

    # ---- mean pool over tokens per batch -> (B, D) ----
    feat = jnp.concatenate(
        [jnp.mean(x[b * N:(b + 1) * N], axis=0, keepdims=True) for b in range(B)],
        axis=0)

    # ---- FCLayer: Linear + BatchNorm1d (eval mode) + Dropout (identity) ----
    f = _dot(feat, wfc_ref[...]) + _vrow(vec_ref, ROW_B_FC, FC_DIM)      # (B,FC)
    f = ((f - _vrow(vec_ref, ROW_BN_M, FC_DIM))
         * lax.rsqrt(_vrow(vec_ref, ROW_BN_V, FC_DIM) + BN_EPS)
         * _vrow(vec_ref, ROW_BN_G, FC_DIM)
         + _vrow(vec_ref, ROW_BN_B, FC_DIM))
    # relu=False; Dropout(p=0.5) is identity in eval mode.

    # ---- Classifier: Linear -> logits ----
    o_ref[...] = _dot(f, wcls_ref[...]) + _vrow(vec_ref, ROW_B_CLS, N_CLASSES)


# ------------------------------ wrapper -------------------------------------
def mcsnet_forward(x, params):
    """x: (B, C, H, W) float32 NCHW image.  Returns logits (B, n_classes)."""
    # glue: extract non-overlapping P x P patches, flattened (C, P, P) order.
    # (tiny — XLA handles it; the single fused kernel does everything else)
    xp = x.reshape(B, C, H // P, P, W // P, P)
    xp = jnp.transpose(xp, (0, 2, 4, 1, 3, 5))          # (B, h, w, C, P, P)
    xp = xp.reshape(B * N, PDIM)

    return pl.pallas_call(
        mcsnet_fused_kernel,
        out_shape=jax.ShapeDtypeStruct((B, N_CLASSES), jnp.float32),
    )(xp, params["w_pe"], params["pos"], params["w_qkv"], params["w_proj"],
      params["w1"], params["w2"], params["w_fc"], params["w_cls"],
      params["vec"])


# --------------------------- parameter init ---------------------------------
def init_params(key):
    ks = jax.random.split(key, 12)
    f32, bf16 = jnp.float32, jnp.bfloat16

    def normal(k, shape, std):
        return jax.random.normal(k, shape, dtype=f32) * std

    def pad_row(v):
        v = jnp.asarray(v, f32).reshape(-1)
        return jnp.pad(v, (0, VEC_W - v.shape[0]))

    params = {}
    # patch embed (kaiming-ish, fan_in = PDIM); weights stored bf16 for MXU
    params["w_pe"] = normal(ks[0], (PDIM, D), (2.0 / PDIM) ** 0.5).astype(bf16)
    params["pos"] = normal(ks[1], (N, D), 0.02).astype(f32)

    wq = normal(ks[2], (D, D), (2.0 / D) ** 0.5)
    wk = normal(ks[3], (D, D), (2.0 / D) ** 0.5)
    wv = normal(ks[4], (D, D), (2.0 / D) ** 0.5)
    params["w_qkv"] = jnp.stack([wq, wk, wv], axis=0).astype(bf16)   # (3, D, D)
    params["w_proj"] = normal(ks[5], (D, D), (2.0 / D) ** 0.5).astype(bf16)
    params["w1"] = normal(ks[6], (D, MLP), (2.0 / D) ** 0.5).astype(bf16)
    params["w2"] = normal(ks[7], (MLP, D), (2.0 / MLP) ** 0.5).astype(bf16)

    # FCLayer Linear: kaiming_normal fan_out -> std = sqrt(2 / FC_DIM)
    params["w_fc"] = normal(ks[8], (D, FC_DIM), (2.0 / FC_DIM) ** 0.5).astype(bf16)
    # Classifier Linear: weight ~ N(0, 0.001)
    params["w_cls"] = normal(ks[9], (FC_DIM, N_CLASSES), 0.001).astype(bf16)

    # packed bias / LN / BN table (f32, one row per vector, zero-padded)
    rows = [None] * N_VROWS
    rows[ROW_B_PE] = jnp.zeros((D,), f32)
    rows[ROW_LN1_G] = jnp.ones((D,), f32)
    rows[ROW_LN1_B] = jnp.zeros((D,), f32)
    rows[ROW_B_Q] = jnp.zeros((D,), f32)
    rows[ROW_B_K] = jnp.zeros((D,), f32)
    rows[ROW_B_V] = jnp.zeros((D,), f32)
    rows[ROW_B_PROJ] = jnp.zeros((D,), f32)
    rows[ROW_LN2_G] = jnp.ones((D,), f32)
    rows[ROW_LN2_B] = jnp.zeros((D,), f32)
    rows[ROW_B1] = jnp.zeros((MLP,), f32)
    rows[ROW_B2] = jnp.zeros((D,), f32)
    rows[ROW_B_FC] = jnp.zeros((FC_DIM,), f32)
    rows[ROW_BN_G] = 1.0 + normal(ks[10], (FC_DIM,), 0.02)   # BN weight ~ N(1,.02)
    rows[ROW_BN_B] = jnp.zeros((FC_DIM,), f32)               # BN bias = 0
    rows[ROW_BN_M] = jnp.zeros((FC_DIM,), f32)               # running mean
    rows[ROW_BN_V] = jnp.ones((FC_DIM,), f32)                # running var
    rows[ROW_B_CLS] = jnp.zeros((N_CLASSES,), f32)
    params["vec"] = jnp.stack([pad_row(r) for r in rows], axis=0)  # (17, 128)
    return params


# --------------------------------- main --------------------------------------
if __name__ == "__main__":
    key = jax.random.PRNGKey(0)
    k_x, k_p = jax.random.split(key)
    x = jax.random.normal(k_x, (B, C, H, W), dtype=jnp.float32)
    params = init_params(k_p)

    logits = jax.jit(mcsnet_forward)(x, params)
    jax.block_until_ready(logits)
    assert logits.shape == (B, N_CLASSES)
    assert logits.dtype == jnp.float32
    print("KERNEL_OK")
</pallas_src>

<mosaic_0001>
module attributes {stable_mosaic.version = 11 : i64} {
  func.func @mcsnet_fused_kernel(%arg0: memref<32x48xf32, #tpu.memory_space<vmem>>, %arg1: memref<48x32xbf16, #tpu.memory_space<vmem>>, %arg2: memref<16x32xf32, #tpu.memory_space<vmem>>, %arg3: memref<3x32x32xbf16, #tpu.memory_space<vmem>>, %arg4: memref<32x32xbf16, #tpu.memory_space<vmem>>, %arg5: memref<32x128xbf16, #tpu.memory_space<vmem>>, %arg6: memref<128x32xbf16, #tpu.memory_space<vmem>>, %arg7: memref<32x32xbf16, #tpu.memory_space<vmem>>, %arg8: memref<32x8xbf16, #tpu.memory_space<vmem>>, %arg9: memref<17x128xf32, #tpu.memory_space<vmem>>, %arg10: memref<2x8xf32, #tpu.memory_space<vmem>>) attributes {dimension_semantics = [], scalar_prefetch = 0 : i64, scratch_operands = 0 : i64, tpu.core_type = #tpu.core_type<tc>} {
    %c0 = arith.constant 0 : index
    %c0_0 = arith.constant 0 : index
    %0 = vector.load %arg0[%c0, %c0_0] : memref<32x48xf32, #tpu.memory_space<vmem>>, vector<32x48xf32>
    %c0_1 = arith.constant 0 : index
    %c0_2 = arith.constant 0 : index
    %1 = vector.load %arg1[%c0_1, %c0_2] : memref<48x32xbf16, #tpu.memory_space<vmem>>, vector<48x32xbf16>
    %2 = arith.truncf %0 : vector<32x48xf32> to vector<32x48xbf16>
    %cst = arith.constant dense<0.000000e+00> : vector<32x32xf32>
    %3 = tpu.matmul %2, %1, %cst {dimension_numbers = #tpu.dot_dimension_numbers<[1], [0], [0], [1], [0, 0, 1, 1], [], []>} : vector<32x48xbf16>, vector<48x32xbf16>, vector<32x32xf32> -> vector<32x32xf32>
    %c0_3 = arith.constant 0 : index
    %c0_4 = arith.constant 0 : index
    %4 = vector.load %arg9[%c0_3, %c0_4] : memref<17x128xf32, #tpu.memory_space<vmem>>, vector<1x32xf32>
    %5 = vector.broadcast %4 : vector<1x32xf32> to vector<32x32xf32>
    %6 = arith.addf %3, %5 : vector<32x32xf32>
    %c0_5 = arith.constant 0 : index
    %c0_6 = arith.constant 0 : index
    %7 = vector.load %arg2[%c0_5, %c0_6] : memref<16x32xf32, #tpu.memory_space<vmem>>, vector<16x32xf32>
    %8 = tpu.concatenate %7, %7 in 0 : vector<16x32xf32>, vector<16x32xf32> -> vector<32x32xf32>
    %9 = arith.addf %6, %8 : vector<32x32xf32>
    %c1 = arith.constant 1 : index
    %c0_7 = arith.constant 0 : index
    %10 = vector.load %arg9[%c1, %c0_7] : memref<17x128xf32, #tpu.memory_space<vmem>>, vector<1x32xf32>
    %c2 = arith.constant 2 : index
    %c0_8 = arith.constant 0 : index
    %11 = vector.load %arg9[%c2, %c0_8] : memref<17x128xf32, #tpu.memory_space<vmem>>, vector<1x32xf32>
    %cst_9 = arith.constant dense<0.000000e+00> : vector<32xf32>
    %12 = vector.multi_reduction <add>, %9, %cst_9 [1] : vector<32x32xf32> to vector<32xf32>
    %13 = vector.shape_cast %12 : vector<32xf32> to vector<32x1xf32>
    %cst_10 = arith.constant 3.200000e+01 : f32
    %14 = vector.broadcast %cst_10 : f32 to vector<32x1xf32>
    %15 = arith.divf %13, %14 : vector<32x1xf32>
    %16 = vector.broadcast %15 : vector<32x1xf32> to vector<32x32xf32>
    %17 = arith.subf %9, %16 : vector<32x32xf32>
    %18 = arith.mulf %17, %17 : vector<32x32xf32>
    %cst_11 = arith.constant dense<0.000000e+00> : vector<32xf32>
    %19 = vector.multi_reduction <add>, %18, %cst_11 [1] : vector<32x32xf32> to vector<32xf32>
    %20 = vector.shape_cast %19 : vector<32xf32> to vector<32x1xf32>
    %cst_12 = arith.constant 3.200000e+01 : f32
    %21 = vector.broadcast %cst_12 : f32 to vector<32x1xf32>
    %22 = arith.divf %20, %21 : vector<32x1xf32>
    %23 = vector.broadcast %15 : vector<32x1xf32> to vector<32x32xf32>
    %24 = arith.subf %9, %23 : vector<32x32xf32>
    %cst_13 = arith.constant 9.99999997E-7 : f32
    %25 = vector.broadcast %cst_13 : f32 to vector<32x1xf32>
    %26 = arith.addf %22, %25 : vector<32x1xf32>
    %27 = math.rsqrt %26 : vector<32x1xf32>
    %28 = vector.broadcast %27 : vector<32x1xf32> to vector<32x32xf32>
    %29 = arith.mulf %24, %28 : vector<32x32xf32>
    %30 = vector.broadcast %10 : vector<1x32xf32> to vector<32x32xf32>
    %31 = arith.mulf %29, %30 : vector<32x32xf32>
    %32 = vector.broadcast %11 : vector<1x32xf32> to vector<32x32xf32>
    %33 = arith.addf %31, %32 : vector<32x32xf32>
    %34 = arith.truncf %33 : vector<32x32xf32> to vector<32x32xbf16>
    %c0_14 = arith.constant 0 : index
    %c0_15 = arith.constant 0 : index
    %c0_16 = arith.constant 0 : index
    %35 = vector.load %arg3[%c0_14, %c0_15, %c0_16] : memref<3x32x32xbf16, #tpu.memory_space<vmem>>, vector<1x32x32xbf16>
    %36 = vector.shape_cast %35 : vector<1x32x32xbf16> to vector<32x32xbf16>
    %cst_17 = arith.constant dense<0.000000e+00> : vector<32x32xf32>
    %37 = tpu.matmul %34, %36, %cst_17 {dimension_numbers = #tpu.dot_dimension_numbers<[1], [0], [0], [1], [0, 0, 1, 1], [], []>} : vector<32x32xbf16>, vector<32x32xbf16>, vector<32x32xf32> -> vector<32x32xf32>
    %c3 = arith.constant 3 : index
    %c0_18 = arith.constant 0 : index
    %38 = vector.load %arg9[%c3, %c0_18] : memref<17x128xf32, #tpu.memory_space<vmem>>, vector<1x32xf32>
    %39 = vector.broadcast %38 : vector<1x32xf32> to vector<32x32xf32>
    %40 = arith.addf %37, %39 : vector<32x32xf32>
    %c1_19 = arith.constant 1 : index
    %c0_20 = arith.constant 0 : index
    %c0_21 = arith.constant 0 : index
    %41 = vector.load %arg3[%c1_19, %c0_20, %c0_21] : memref<3x32x32xbf16, #tpu.memory_space<vmem>>, vector<1x32x32xbf16>
    %42 = vector.shape_cast %41 : vector<1x32x32xbf16> to vector<32x32xbf16>
    %cst_22 = arith.constant dense<0.000000e+00> : vector<32x32xf32>
    %43 = tpu.matmul %34, %42, %cst_22 {dimension_numbers = #tpu.dot_dimension_numbers<[1], [0], [0], [1], [0, 0, 1, 1], [], []>} : vector<32x32xbf16>, vector<32x32xbf16>, vector<32x32xf32> -> vector<32x32xf32>
    %c4 = arith.constant 4 : index
    %c0_23 = arith.constant 0 : index
    %44 = vector.load %arg9[%c4, %c0_23] : memref<17x128xf32, #tpu.memory_space<vmem>>, vector<1x32xf32>
    %45 = vector.broadcast %44 : vector<1x32xf32> to vector<32x32xf32>
    %46 = arith.addf %43, %45 : vector<32x32xf32>
    %c2_24 = arith.constant 2 : index
    %c0_25 = arith.constant 0 : index
    %c0_26 = arith.constant 0 : index
    %47 = vector.load %arg3[%c2_24, %c0_25, %c0_26] : memref<3x32x32xbf16, #tpu.memory_space<vmem>>, vector<1x32x32xbf16>
    %48 = vector.shape_cast %47 : vector<1x32x32xbf16> to vector<32x32xbf16>
    %cst_27 = arith.constant dense<0.000000e+00> : vector<32x32xf32>
    %49 = tpu.matmul %34, %48, %cst_27 {dimension_numbers = #tpu.dot_dimension_numbers<[1], [0], [0], [1], [0, 0, 1, 1], [], []>} : vector<32x32xbf16>, vector<32x32xbf16>, vector<32x32xf32> -> vector<32x32xf32>
    %c5 = arith.constant 5 : index
    %c0_28 = arith.constant 0 : index
    %50 = vector.load %arg9[%c5, %c0_28] : memref<17x128xf32, #tpu.memory_space<vmem>>, vector<1x32xf32>
    %51 = vector.broadcast %50 : vector<1x32xf32> to vector<32x32xf32>
    %52 = arith.addf %49, %51 : vector<32x32xf32>
    %53 = vector.extract_strided_slice %40 {offsets = [0, 0], sizes = [16, 32], strides = [1, 1]} : vector<32x32xf32> to vector<16x32xf32>
    %54 = arith.truncf %53 : vector<16x32xf32> to vector<16x32xbf16>
    %55 = vector.extract_strided_slice %46 {offsets = [0, 0], sizes = [16, 32], strides = [1, 1]} : vector<32x32xf32> to vector<16x32xf32>
    %56 = arith.truncf %55 : vector<16x32xf32> to vector<16x32xbf16>
    %57 = vector.extract_strided_slice %52 {offsets = [0, 0], sizes = [16, 32], strides = [1, 1]} : vector<32x32xf32> to vector<16x32xf32>
    %58 = arith.truncf %57 : vector<16x32xf32> to vector<16x32xbf16>
    %cst_29 = arith.constant dense<0.000000e+00> : vector<16x16xf32>
    %59 = tpu.matmul %54, %56, %cst_29 {dimension_numbers = #tpu.dot_dimension_numbers<[1], [1], [0], [0], [0, 0, 1, 0], [], []>} : vector<16x32xbf16>, vector<16x32xbf16>, vector<16x16xf32> -> vector<16x16xf32>
    %cst_30 = arith.constant 0.176776692 : f32
    %60 = vector.broadcast %cst_30 : f32 to vector<16x16xf32>
    %61 = arith.mulf %59, %60 : vector<16x16xf32>
    %cst_31 = arith.constant dense<0xFF800000> : vector<16xf32>
    %62 = vector.multi_reduction <maximumf>, %61, %cst_31 [1] : vector<16x16xf32> to vector<16xf32>
    %cst_32 = arith.constant 0xFF800000 : f32
    %63 = vector.broadcast %cst_32 : f32 to vector<16xf32>
    %64 = arith.maximumf %63, %62 : vector<16xf32>
    %65 = vector.shape_cast %64 : vector<16xf32> to vector<16x1xf32>
    %66 = vector.broadcast %65 : vector<16x1xf32> to vector<16x16xf32>
    %67 = arith.subf %61, %66 : vector<16x16xf32>
    %68 = math.exp %67 : vector<16x16xf32>
    %cst_33 = arith.constant dense<0.000000e+00> : vector<16xf32>
    %69 = vector.multi_reduction <add>, %68, %cst_33 [1] : vector<16x16xf32> to vector<16xf32>
    %70 = vector.shape_cast %69 : vector<16xf32> to vector<16x1xf32>
    %71 = vector.broadcast %70 : vector<16x1xf32> to vector<16x16xf32>
    %72 = arith.divf %68, %71 : vector<16x16xf32>
    %73 = arith.truncf %72 : vector<16x16xf32> to vector<16x16xbf16>
    %cst_34 = arith.constant dense<0.000000e+00> : vector<16x32xf32>
    %74 = tpu.matmul %73, %58, %cst_34 {dimension_numbers = #tpu.dot_dimension_numbers<[1], [0], [0], [1], [0, 0, 1, 1], [], []>} : vector<16x16xbf16>, vector<16x32xbf16>, vector<16x32xf32> -> vector<16x32xf32>
    %75 = vector.extract_strided_slice %40 {offsets = [16, 0], sizes = [16, 32], strides = [1, 1]} : vector<32x32xf32> to vector<16x32xf32>
    %76 = arith.truncf %75 : vector<16x32xf32> to vector<16x32xbf16>
    %77 = vector.extract_strided_slice %46 {offsets = [16, 0], sizes = [16, 32], strides = [1, 1]} : vector<32x32xf32> to vector<16x32xf32>
    %78 = arith.truncf %77 : vector<16x32xf32> to vector<16x32xbf16>
    %79 = vector.extract_strided_slice %52 {offsets = [16, 0], sizes = [16, 32], strides = [1, 1]} : vector<32x32xf32> to vector<16x32xf32>
    %80 = arith.truncf %79 : vector<16x32xf32> to vector<16x32xbf16>
    %cst_35 = arith.constant dense<0.000000e+00> : vector<16x16xf32>
    %81 = tpu.matmul %76, %78, %cst_35 {dimension_numbers = #tpu.dot_dimension_numbers<[1], [1], [0], [0], [0, 0, 1, 0], [], []>} : vector<16x32xbf16>, vector<16x32xbf16>, vector<16x16xf32> -> vector<16x16xf32>
    %cst_36 = arith.constant 0.176776692 : f32
    %82 = vector.broadcast %cst_36 : f32 to vector<16x16xf32>
    %83 = arith.mulf %81, %82 : vector<16x16xf32>
    %cst_37 = arith.constant dense<0xFF800000> : vector<16xf32>
    %84 = vector.multi_reduction <maximumf>, %83, %cst_37 [1] : vector<16x16xf32> to vector<16xf32>
    %cst_38 = arith.constant 0xFF800000 : f32
    %85 = vector.broadcast %cst_38 : f32 to vector<16xf32>
    %86 = arith.maximumf %85, %84 : vector<16xf32>
    %87 = vector.shape_cast %86 : vector<16xf32> to vector<16x1xf32>
    %88 = vector.broadcast %87 : vector<16x1xf32> to vector<16x16xf32>
    %89 = arith.subf %83, %88 : vector<16x16xf32>
    %90 = math.exp %89 : vector<16x16xf32>
    %cst_39 = arith.constant dense<0.000000e+00> : vector<16xf32>
    %91 = vector.multi_reduction <add>, %90, %cst_39 [1] : vector<16x16xf32> to vector<16xf32>
    %92 = vector.shape_cast %91 : vector<16xf32> to vector<16x1xf32>
    %93 = vector.broadcast %92 : vector<16x1xf32> to vector<16x16xf32>
    %94 = arith.divf %90, %93 : vector<16x16xf32>
    %95 = arith.truncf %94 : vector<16x16xf32> to vector<16x16xbf16>
    %cst_40 = arith.constant dense<0.000000e+00> : vector<16x32xf32>
    %96 = tpu.matmul %95, %80, %cst_40 {dimension_numbers = #tpu.dot_dimension_numbers<[1], [0], [0], [1], [0, 0, 1, 1], [], []>} : vector<16x16xbf16>, vector<16x32xbf16>, vector<16x32xf32> -> vector<16x32xf32>
    %97 = tpu.concatenate %74, %96 in 0 : vector<16x32xf32>, vector<16x32xf32> -> vector<32x32xf32>
    %c0_41 = arith.constant 0 : index
    %c0_42 = arith.constant 0 : index
    %98 = vector.load %arg4[%c0_41, %c0_42] : memref<32x32xbf16, #tpu.memory_space<vmem>>, vector<32x32xbf16>
    %99 = arith.truncf %97 : vector<32x32xf32> to vector<32x32xbf16>
    %cst_43 = arith.constant dense<0.000000e+00> : vector<32x32xf32>
    %100 = tpu.matmul %99, %98, %cst_43 {dimension_numbers = #tpu.dot_dimension_numbers<[1], [0], [0], [1], [0, 0, 1, 1], [], []>} : vector<32x32xbf16>, vector<32x32xbf16>, vector<32x32xf32> -> vector<32x32xf32>
    %c6 = arith.constant 6 : index
    %c0_44 = arith.constant 0 : index
    %101 = vector.load %arg9[%c6, %c0_44] : memref<17x128xf32, #tpu.memory_space<vmem>>, vector<1x32xf32>
    %102 = vector.broadcast %101 : vector<1x32xf32> to vector<32x32xf32>
    %103 = arith.addf %100, %102 : vector<32x32xf32>
    %104 = arith.addf %9, %103 : vector<32x32xf32>
    %c7 = arith.constant 7 : index
    %c0_45 = arith.constant 0 : index
    %105 = vector.load %arg9[%c7, %c0_45] : memref<17x128xf32, #tpu.memory_space<vmem>>, vector<1x32xf32>
    %c8 = arith.constant 8 : index
    %c0_46 = arith.constant 0 : index
    %106 = vector.load %arg9[%c8, %c0_46] : memref<17x128xf32, #tpu.memory_space<vmem>>, vector<1x32xf32>
    %cst_47 = arith.constant dense<0.000000e+00> : vector<32xf32>
    %107 = vector.multi_reduction <add>, %104, %cst_47 [1] : vector<32x32xf32> to vector<32xf32>
    %108 = vector.shape_cast %107 : vector<32xf32> to vector<32x1xf32>
    %cst_48 = arith.constant 3.200000e+01 : f32
    %109 = vector.broadcast %cst_48 : f32 to vector<32x1xf32>
    %110 = arith.divf %108, %109 : vector<32x1xf32>
    %111 = vector.broadcast %110 : vector<32x1xf32> to vector<32x32xf32>
    %112 = arith.subf %104, %111 : vector<32x32xf32>
    %113 = arith.mulf %112, %112 : vector<32x32xf32>
    %cst_49 = arith.constant dense<0.000000e+00> : vector<32xf32>
    %114 = vector.multi_reduction <add>, %113, %cst_49 [1] : vector<32x32xf32> to vector<32xf32>
    %115 = vector.shape_cast %114 : vector<32xf32> to vector<32x1xf32>
    %cst_50 = arith.constant 3.200000e+01 : f32
    %116 = vector.broadcast %cst_50 : f32 to vector<32x1xf32>
    %117 = arith.divf %115, %116 : vector<32x1xf32>
    %118 = vector.broadcast %110 : vector<32x1xf32> to vector<32x32xf32>
    %119 = arith.subf %104, %118 : vector<32x32xf32>
    %cst_51 = arith.constant 9.99999997E-7 : f32
    %120 = vector.broadcast %cst_51 : f32 to vector<32x1xf32>
    %121 = arith.addf %117, %120 : vector<32x1xf32>
    %122 = math.rsqrt %121 : vector<32x1xf32>
    %123 = vector.broadcast %122 : vector<32x1xf32> to vector<32x32xf32>
    %124 = arith.mulf %119, %123 : vector<32x32xf32>
    %125 = vector.broadcast %105 : vector<1x32xf32> to vector<32x32xf32>
    %126 = arith.mulf %124, %125 : vector<32x32xf32>
    %127 = vector.broadcast %106 : vector<1x32xf32> to vector<32x32xf32>
    %128 = arith.addf %126, %127 : vector<32x32xf32>
    %c0_52 = arith.constant 0 : index
    %c0_53 = arith.constant 0 : index
    %129 = vector.load %arg5[%c0_52, %c0_53] : memref<32x128xbf16, #tpu.memory_space<vmem>>, vector<32x128xbf16>
    %130 = arith.truncf %128 : vector<32x32xf32> to vector<32x32xbf16>
    %cst_54 = arith.constant dense<0.000000e+00> : vector<32x128xf32>
    %131 = tpu.matmul %130, %129, %cst_54 {dimension_numbers = #tpu.dot_dimension_numbers<[1], [0], [0], [1], [0, 0, 1, 1], [], []>} : vector<32x32xbf16>, vector<32x128xbf16>, vector<32x128xf32> -> vector<32x128xf32>
    %c9 = arith.constant 9 : index
    %c0_55 = arith.constant 0 : index
    %132 = vector.load %arg9[%c9, %c0_55] : memref<17x128xf32, #tpu.memory_space<vmem>>, vector<1x128xf32>
    %133 = vector.broadcast %132 : vector<1x128xf32> to vector<32x128xf32>
    %134 = arith.addf %131, %133 : vector<32x128xf32>
    %135 = arith.mulf %134, %134 : vector<32x128xf32>
    %136 = arith.mulf %134, %135 : vector<32x128xf32>
    %cst_56 = arith.constant 4.471500e-02 : f32
    %137 = vector.broadcast %cst_56 : f32 to vector<32x128xf32>
    %138 = arith.mulf %137, %136 : vector<32x128xf32>
    %139 = arith.addf %134, %138 : vector<32x128xf32>
    %cst_57 = arith.constant 0.797884583 : f32
    %140 = vector.broadcast %cst_57 : f32 to vector<32x128xf32>
    %141 = arith.mulf %140, %139 : vector<32x128xf32>
    %142 = math.tanh %141 : vector<32x128xf32>
    %cst_58 = arith.constant 1.000000e+00 : f32
    %143 = vector.broadcast %cst_58 : f32 to vector<32x128xf32>
    %144 = arith.addf %143, %142 : vector<32x128xf32>
    %cst_59 = arith.constant 5.000000e-01 : f32
    %145 = vector.broadcast %cst_59 : f32 to vector<32x128xf32>
    %146 = arith.mulf %145, %144 : vector<32x128xf32>
    %147 = arith.mulf %134, %146 : vector<32x128xf32>
    %c0_60 = arith.constant 0 : index
    %c0_61 = arith.constant 0 : index
    %148 = vector.load %arg6[%c0_60, %c0_61] : memref<128x32xbf16, #tpu.memory_space<vmem>>, vector<128x32xbf16>
    %149 = arith.truncf %147 : vector<32x128xf32> to vector<32x128xbf16>
    %cst_62 = arith.constant dense<0.000000e+00> : vector<32x32xf32>
    %150 = tpu.matmul %149, %148, %cst_62 {dimension_numbers = #tpu.dot_dimension_numbers<[1], [0], [0], [1], [0, 0, 1, 1], [], []>} : vector<32x128xbf16>, vector<128x32xbf16>, vector<32x32xf32> -> vector<32x32xf32>
    %c10 = arith.constant 10 : index
    %c0_63 = arith.constant 0 : index
    %151 = vector.load %arg9[%c10, %c0_63] : memref<17x128xf32, #tpu.memory_space<vmem>>, vector<1x32xf32>
    %152 = vector.broadcast %151 : vector<1x32xf32> to vector<32x32xf32>
    %153 = arith.addf %150, %152 : vector<32x32xf32>
    %154 = arith.addf %104, %153 : vector<32x32xf32>
    %155 = vector.extract_strided_slice %154 {offsets = [0, 0], sizes = [16, 32], strides = [1, 1]} : vector<32x32xf32> to vector<16x32xf32>
    %cst_64 = arith.constant dense<0.000000e+00> : vector<32xf32>
    %156 = vector.multi_reduction <add>, %155, %cst_64 [0] : vector<16x32xf32> to vector<32xf32>
    %157 = vector.shape_cast %156 : vector<32xf32> to vector<1x32xf32>
    %cst_65 = arith.constant 1.600000e+01 : f32
    %158 = vector.broadcast %cst_65 : f32 to vector<1x32xf32>
    %159 = arith.divf %157, %158 : vector<1x32xf32>
    %160 = vector.extract_strided_slice %154 {offsets = [16, 0], sizes = [16, 32], strides = [1, 1]} : vector<32x32xf32> to vector<16x32xf32>
    %cst_66 = arith.constant dense<0.000000e+00> : vector<32xf32>
    %161 = vector.multi_reduction <add>, %160, %cst_66 [0] : vector<16x32xf32> to vector<32xf32>
    %162 = vector.shape_cast %161 : vector<32xf32> to vector<1x32xf32>
    %cst_67 = arith.constant 1.600000e+01 : f32
    %163 = vector.broadcast %cst_67 : f32 to vector<1x32xf32>
    %164 = arith.divf %162, %163 : vector<1x32xf32>
    %165 = tpu.concatenate %159, %164 in 0 : vector<1x32xf32>, vector<1x32xf32> -> vector<2x32xf32>
    %c0_68 = arith.constant 0 : index
    %c0_69 = arith.constant 0 : index
    %166 = vector.load %arg7[%c0_68, %c0_69] : memref<32x32xbf16, #tpu.memory_space<vmem>>, vector<32x32xbf16>
    %167 = arith.truncf %165 : vector<2x32xf32> to vector<2x32xbf16>
    %cst_70 = arith.constant dense<0.000000e+00> : vector<2x32xf32>
    %168 = tpu.matmul %167, %166, %cst_70 {dimension_numbers = #tpu.dot_dimension_numbers<[1], [0], [0], [1], [0, 0, 1, 1], [], []>} : vector<2x32xbf16>, vector<32x32xbf16>, vector<2x32xf32> -> vector<2x32xf32>
    %c11 = arith.constant 11 : index
    %c0_71 = arith.constant 0 : index
    %169 = vector.load %arg9[%c11, %c0_71] : memref<17x128xf32, #tpu.memory_space<vmem>>, vector<1x32xf32>
    %170 = vector.broadcast %169 : vector<1x32xf32> to vector<2x32xf32>
    %171 = arith.addf %168, %170 : vector<2x32xf32>
    %c14 = arith.constant 14 : index
    %c0_72 = arith.constant 0 : index
    %172 = vector.load %arg9[%c14, %c0_72] : memref<17x128xf32, #tpu.memory_space<vmem>>, vector<1x32xf32>
    %173 = vector.broadcast %172 : vector<1x32xf32> to vector<2x32xf32>
    %174 = arith.subf %171, %173 : vector<2x32xf32>
    %c15 = arith.constant 15 : index
    %c0_73 = arith.constant 0 : index
    %175 = vector.load %arg9[%c15, %c0_73] : memref<17x128xf32, #tpu.memory_space<vmem>>, vector<1x32xf32>
    %cst_74 = arith.constant 9.99999974E-6 : f32
    %176 = vector.broadcast %cst_74 : f32 to vector<1x32xf32>
    %177 = arith.addf %175, %176 : vector<1x32xf32>
    %178 = math.rsqrt %177 : vector<1x32xf32>
    %179 = vector.broadcast %178 : vector<1x32xf32> to vector<2x32xf32>
    %180 = arith.mulf %174, %179 : vector<2x32xf32>
    %c12 = arith.constant 12 : index
    %c0_75 = arith.constant 0 : index
    %181 = vector.load %arg9[%c12, %c0_75] : memref<17x128xf32, #tpu.memory_space<vmem>>, vector<1x32xf32>
    %182 = vector.broadcast %181 : vector<1x32xf32> to vector<2x32xf32>
    %183 = arith.mulf %180, %182 : vector<2x32xf32>
    %c13 = arith.constant 13 : index
    %c0_76 = arith.constant 0 : index
    %184 = vector.load %arg9[%c13, %c0_76] : memref<17x128xf32, #tpu.memory_space<vmem>>, vector<1x32xf32>
    %185 = vector.broadcast %184 : vector<1x32xf32> to vector<2x32xf32>
    %186 = arith.addf %183, %185 : vector<2x32xf32>
    %c0_77 = arith.constant 0 : index
    %c0_78 = arith.constant 0 : index
    %187 = vector.load %arg8[%c0_77, %c0_78] : memref<32x8xbf16, #tpu.memory_space<vmem>>, vector<32x8xbf16>
    %188 = arith.truncf %186 : vector<2x32xf32> to vector<2x32xbf16>
    %cst_79 = arith.constant dense<0.000000e+00> : vector<2x8xf32>
    %189 = tpu.matmul %188, %187, %cst_79 {dimension_numbers = #tpu.dot_dimension_numbers<[1], [0], [0], [1], [0, 0, 1, 1], [], []>} : vector<2x32xbf16>, vector<32x8xbf16>, vector<2x8xf32> -> vector<2x8xf32>
    %c16 = arith.constant 16 : index
    %c0_80 = arith.constant 0 : index
    %190 = vector.load %arg9[%c16, %c0_80] : memref<17x128xf32, #tpu.memory_space<vmem>>, vector<1x8xf32>
    %191 = vector.broadcast %190 : vector<1x8xf32> to vector<2x8xf32>
    %192 = arith.addf %189, %191 : vector<2x8xf32>
    %c0_81 = arith.constant 0 : index
    %c0_82 = arith.constant 0 : index
    %193 = vector.load %arg10[%c0_81, %c0_82] : memref<2x8xf32, #tpu.memory_space<vmem>>, vector<2x8xf32>
    tpu.vector_store %arg10[%c0_81, %c0_82], %192 {strides = array<i32>} : memref<2x8xf32, #tpu.memory_space<vmem>>, vector<2x8xf32>,
    return
  }
}

</mosaic_0001>

<llo_original>
// kernel: mcsnet_forward.1
$region0: #{mcsnet_forward.1}
  #allocation0 [shape = 'u32[]', space=smem, size = 0x4, offset = 0x4, fixed_abs, tag = 'smem constant byte address 0x4 - core index']
  #allocation1 [shape = 'u32[144,128]{1,0:T(1,128)}', space=vmem, size = 0x12000, scoped, tag = 'internal scratch']
  %s0 = inlined_call_operand.vmem [shape: f32[32,48], index: 0, kind: input, shape index: {}]
  %s1 = inlined_call_operand.vmem [shape: bf16[48,32], index: 1, kind: input, shape index: {}]
  %s2 = inlined_call_operand.vmem [shape: f32[16,32], index: 2, kind: input, shape index: {}]
  %s3 = inlined_call_operand.vmem [shape: bf16[3,32,32], index: 3, kind: input, shape index: {}]
  %s4 = inlined_call_operand.vmem [shape: bf16[32,32], index: 4, kind: input, shape index: {}]
  %s5 = inlined_call_operand.vmem [shape: bf16[32,128], index: 5, kind: input, shape index: {}]
  %s6 = inlined_call_operand.vmem [shape: bf16[128,32], index: 6, kind: input, shape index: {}]
  %s7 = inlined_call_operand.vmem [shape: bf16[32,32], index: 7, kind: input, shape index: {}]
  %s8 = inlined_call_operand.vmem [shape: bf16[32,8], index: 8, kind: input, shape index: {}]
  %s9 = inlined_call_operand.vmem [shape: f32[17,128], index: 9, kind: input, shape index: {}]
  %s10 = inlined_call_operand.hbm [shape: f32[2,8], index: 10, kind: output, shape index: {}]
  %s11 = sld [smem:[#allocation0]]
  $region50: #{mcsnet_forward.1} parent=0
    _
  %s13 = ssub.s32 1, %s11
  %s14 = scalar_select 0, %s13, %s11
  $region1: #{mcsnet_forward.1} parent=0
    #allocation2 [shape = 'u8[1024]{0}', space=vmem, size = 0x400, scoped, tag = 'output window, operand 0, single buffered']
    #allocation3 [shape = 's32[1]{0}', space=sflag, size = 0x4, scoped, tag = 'scoped memory for mcsnet_forward.1']
    %15 = vsyncpa [#allocation3], 0
    // Predicated region
    $region2: #{mcsnet_forward.1} parent=1 // pred_check
      _
    $region3: #{mcsnet_forward.1} parent=1 // pred_check_branch
      %17 = sbr.rel (0) target = $region5
    $region4: #{mcsnet_forward.1} parent=1 // pred_region
      _
    $region5: #{mcsnet_forward.1} parent=1 // pred_fallthru
      _
    // Predicated region
    $region6: #{mcsnet_forward.1} parent=1 // pred_check
      _
    $region7: #{mcsnet_forward.1} parent=1 // pred_check_branch
      %19 = sbr.rel (0) target = $region9
    $region8: #{mcsnet_forward.1} parent=1 // pred_region
      _
    $region9: #{mcsnet_forward.1} parent=1 // pred_fallthru
      _
    // Predicated region
    $region10: #{mcsnet_forward.1} parent=1 // pred_check
      _
    $region11: #{mcsnet_forward.1} parent=1 // pred_check_branch
      %21 = sbr.rel (0) target = $region13
    $region12: #{mcsnet_forward.1} parent=1 // pred_region
      _
    $region13: #{mcsnet_forward.1} parent=1 // pred_fallthru
      _
    // Predicated region
    $region14: #{mcsnet_forward.1} parent=1 // pred_check
      _
    $region15: #{mcsnet_forward.1} parent=1 // pred_check_branch
      %23 = sbr.rel (0) target = $region17
    $region16: #{mcsnet_forward.1} parent=1 // pred_region
      _
    $region17: #{mcsnet_forward.1} parent=1 // pred_fallthru
      _
    // Predicated region
    $region18: #{mcsnet_forward.1} parent=1 // pred_check
      _
    $region19: #{mcsnet_forward.1} parent=1 // pred_check_branch
      %25 = sbr.rel (0) target = $region21
    $region20: #{mcsnet_forward.1} parent=1 // pred_region
      _
    $region21: #{mcsnet_forward.1} parent=1 // pred_fallthru
      _
    // Predicated region
    $region22: #{mcsnet_forward.1} parent=1 // pred_check
      _
    $region23: #{mcsnet_forward.1} parent=1 // pred_check_branch
      %27 = sbr.rel (0) target = $region25
    $region24: #{mcsnet_forward.1} parent=1 // pred_region
      _
    $region25: #{mcsnet_forward.1} parent=1 // pred_fallthru
      _
    // Predicated region
    $region26: #{mcsnet_forward.1} parent=1 // pred_check
      _
    $region27: #{mcsnet_forward.1} parent=1 // pred_check_branch
      %29 = sbr.rel (0) target = $region29
    $region28: #{mcsnet_forward.1} parent=1 // pred_region
      _
    $region29: #{mcsnet_forward.1} parent=1 // pred_fallthru
      _
    // Predicated region
    $region30: #{mcsnet_forward.1} parent=1 // pred_check
      _
    $region31: #{mcsnet_forward.1} parent=1 // pred_check_branch
      %31 = sbr.rel (0) target = $region33
    $region32: #{mcsnet_forward.1} parent=1 // pred_region
      _
    $region33: #{mcsnet_forward.1} parent=1 // pred_fallthru
      _
    // Predicated region
    $region34: #{mcsnet_forward.1} parent=1 // pred_check
      _
    $region35: #{mcsnet_forward.1} parent=1 // pred_check_branch
      %33 = sbr.rel (0) target = $region37
    $region36: #{mcsnet_forward.1} parent=1 // pred_region
      _
    $region37: #{mcsnet_forward.1} parent=1 // pred_fallthru
      _
    // Predicated region
    $region38: #{mcsnet_forward.1} parent=1 // pred_check
      _
    $region39: #{mcsnet_forward.1} parent=1 // pred_check_branch
      %35 = sbr.rel (0) target = $region41
    $region40: #{mcsnet_forward.1} parent=1 // pred_region
      _
    $region41: #{mcsnet_forward.1} parent=1 // pred_fallthru
      _
    %v37 = vld [vmem:[%s0] sm:$0xff]
    %v38 = vld [vmem:[%s0 + $0x8] sm:$0xff]
    %v39 = vld [vmem:[%s0 + $0x10] sm:$0xff]
    %v40 = vld [vmem:[%s0 + $0x18] sm:$0xff]
    %v41 = vld [vmem:[%s1] sm:$0xf]
    %v42 = vld [vmem:[%s1 + $0x4] sm:$0xf]
    %v43 = vld [vmem:[%s1 + $0x8] sm:$0xf]
    %v44 = vld [vmem:[%s1 + $0xc] sm:$0xf]
    %v45 = vld [vmem:[%s1 + $0x10] sm:$0xf]
    %v46 = vld [vmem:[%s1 + $0x14] sm:$0xf]
    %v47 = vpack.c.bf16 %v38, %v37
    %v48 = vpack.c.bf16 %v40, %v39
    %v49 = vld [vmem:[%s9] sm:$0x1]
    %v50 = vlaneseq
    %v51 = vshrl.u32 %v50, 7
    %v52 = vsub.s32 0, %v51
    %v53 = vrot.slane %v49, %v52
    %v60 = vunpack.c.l.b16 %v41
    %v61 = vunpack.c.l.b16 %v42
    %v62 = vunpack.c.l.b16 %v43
    %v63 = vunpack.c.l.b16 %v44
    %v64 = vunpack.c.l.b16 %v45
    %v65 = vunpack.c.l.b16 %v46
    %v66 = vpack.c.b16 %v61, %v60
    %v67 = vpack.c.b16 %v63, %v62
    %v68 = vpack.c.b16 %v65, %v64
    %vm72 = vcmask 392192
    %v74 = vsel %vm72, %v47, 0
    %v77 = vsel %vm72, %v48, 0
    %79 = vmatprep.subr.bf16.mxu0 0
    %80 = vmatpush1.bf16.msra.mxu0 %v66
    %81 = vmatprep.subr.bf16.mxu0 0
    %82 = vmatpush1.bf16.msra.mxu0 %v67
    %83 = vmatprep.subr.bf16.mxu0 0
    %84 = vmatpush1.bf16.msra.mxu0 %v68
    %85 = vmatprep.subr.bf16.mxu0 0
    %86 = vmatpush1.bf16.msra.mxu0 0
    %87 = vmatprep.subr.bf16.mxu0 0
    %88 = vmatpush1.bf16.msra.mxu0 0
    %89 = vmatprep.subr.bf16.mxu0 0
    %90 = vmatpush1.bf16.msra.mxu0 0
    %91 = vmatprep.subr.bf16.mxu0 0
    %92 = vmatpush1.bf16.msra.mxu0 0
    %93 = vmatprep.subr.bf16.mxu0 0
    %94 = vmatpush1.bf16.msra.mxu0 0
    %95 = vmatprep.subr.bf16.mxu0 0
    %96 = vmatpush1.bf16.msra.mxu0 0
    %97 = vmatprep.subr.bf16.mxu0 0
    %98 = vmatpush1.bf16.msra.mxu0 0
    %99 = vmatprep.subr.bf16.mxu0 0
    %100 = vmatpush1.bf16.msra.mxu0 0
    %101 = vmatprep.subr.bf16.mxu0 0
    %102 = vmatpush1.bf16.msra.mxu0 0
    %103 = vmatprep.subr.bf16.mxu0 0
    %104 = vmatpush1.bf16.msra.mxu0 0
    %105 = vmatprep.subr.bf16.mxu0 0
    %106 = vmatpush1.bf16.msra.mxu0 0
    %107 = vmatprep.subr.bf16.mxu0 0
    %108 = vmatpush1.bf16.msra.mxu0 0
    %109 = vmatprep.subr.bf16.mxu0 0
    %110 = vmatpush1.bf16.msra.mxu0 0
    %111 = vmatprep.mubr.bf16.mxu0 0
    %112 = vmatmul.mubr.bf16.gmra.mrb[0].mxu0 %v74
    %v113 = vpop.f32.mrb[0].mxu0
    %v114 = vadd.f32 %v53, %v113
    %v115 = vpop.f32.mrb[0].mxu0
    %v116 = vpop.f32.mrb[0].mxu0
    %v117 = vadd.f32 %v53, %v116
    %v118 = vpop.f32.mrb[0].mxu0
    %119 = vmatprep.mubr.bf16.mxu0 0
    %120 = vmatmul.mubr.bf16.gmra.mrb[0].mxu0 %v77
    %v121 = vpop.f32.mrb[0].mxu0
    %v122 = vadd.f32 %v53, %v121
    %v123 = vpop.f32.mrb[0].mxu0
    %v124 = vpop.f32.mrb[0].mxu0
    %v125 = vadd.f32 %v53, %v124
    %v126 = vpop.f32.mrb[0].mxu0
    %127 = vdwg.mxu0
    %v128 = vld [vmem:[%s2] sm:$0xff]
    %v129 = vld [vmem:[%s2 + $0x8] sm:$0xff]
    %v130 = vadd.f32 %v114, %v128
    %v131 = vadd.f32 %v117, %v129
    %v132 = vadd.f32 %v122, %v128
    %v133 = vadd.f32 %v125, %v129
    %v134 = vld [vmem:[%s9 + $0x1] sm:$0x1]
    %v135 = vld [vmem:[%s9 + $0x2] sm:$0x1]
    %vm136 = vcmask 261120
    %v137 = vsel %vm136, %v130, 0.0
    %138 = vadd.xlane.f32.xlu0 %v137
    %v139 = vpop.xlane.xlu0 %138
    %v140 = vsel %vm136, %v131, 0.0
    %141 = vadd.xlane.f32.xlu0 %v140
    %v142 = vpop.xlane.xlu0 %141
    %v143 = vsel %vm136, %v132, 0.0
    %144 = vadd.xlane.f32.xlu0 %v143
    %v145 = vpop.xlane.xlu0 %144
    %v146 = vsel %vm136, %v133, 0.0
    %147 = vadd.xlane.f32.xlu0 %v146
    %v148 = vpop.xlane.xlu0 %147
    %v149 = vrcp.pop 32.0
    %v150 = vmul.f32 %v139, %v149
    %v151 = vmul.f32 %v142, %v149
    %v152 = vmul.f32 %v145, %v149
    %v153 = vmul.f32 %v148, %v149
    %v154 = vsub.f32 %v130, %v150
    %v155 = vsub.f32 %v131, %v151
    %v156 = vsub.f32 %v132, %v152
    %v157 = vsub.f32 %v133, %v153
    %v158 = vmul.f32 %v154, %v154
    %v159 = vmul.f32 %v155, %v155
    %v160 = vmul.f32 %v156, %v156
    %v161 = vmul.f32 %v157, %v157
    %v162 = vsel %vm136, %v158, 0.0
    %163 = vadd.xlane.f32.xlu0 %v162
    %v164 = vpop.xlane.xlu0 %163
    %v165 = vsel %vm136, %v159, 0.0
    %166 = vadd.xlane.f32.xlu0 %v165
    %v167 = vpop.xlane.xlu0 %166
    %v168 = vsel %vm136, %v160, 0.0
    %169 = vadd.xlane.f32.xlu0 %v168
    %v170 = vpop.xlane.xlu0 %169
    %v171 = vsel %vm136, %v161, 0.0
    %172 = vadd.xlane.f32.xlu0 %v171
    %v173 = vpop.xlane.xlu0 %172
    %v174 = vmul.f32 %v164, %v149
    %v175 = vmul.f32 %v167, %v149
    %v176 = vmul.f32 %v170, %v149
    %v177 = vmul.f32 %v173, %v149
    %v178 = vadd.f32 %v174, 1e-06
    %v179 = vadd.f32 %v175, 1e-06
    %v180 = vadd.f32 %v176, 1e-06
    %v181 = vadd.f32 %v177, 1e-06
    %v182 = vrsqrt.pop %v178
    %v183 = vrsqrt.pop %v179
    %v184 = vrsqrt.pop %v180
    %v185 = vrsqrt.pop %v181
    %v186 = vmul.f32 %v154, %v182
    %v187 = vmul.f32 %v155, %v183
    %v188 = vmul.f32 %v156, %v184
    %v189 = vmul.f32 %v157, %v185
    %v190 = vlaneseq
    %v191 = vshrl.u32 %v190, 7
    %v192 = vsub.s32 0, %v191
    %v193 = vrot.slane %v134, %v192
    %v194 = vmul.f32 %v186, %v193
    %v195 = vmul.f32 %v187, %v193
    %v196 = vmul.f32 %v188, %v193
    %v197 = vmul.f32 %v189, %v193
    %v198 = vlaneseq
    %v199 = vshrl.u32 %v198, 7
    %v200 = vsub.s32 0, %v199
    %v201 = vrot.slane %v135, %v200
    %v202 = vadd.f32 %v194, %v201
    %v203 = vadd.f32 %v195, %v201
    %v204 = vadd.f32 %v196, %v201
    %v205 = vadd.f32 %v197, %v201
    %v206 = vpack.c.bf16 %v203, %v202
    %v207 = vpack.c.bf16 %v205, %v204
    %v208 = vld [vmem:[%s3] sm:$0xf]
    %v209 = vld [vmem:[%s3 + $0x4] sm:$0xf]
    %v210 = vld [vmem:[%s3 + $0x8] sm:$0xf]
    %v211 = vld [vmem:[%s3 + $0xc] sm:$0xf]
    %v212 = vld [vmem:[%s9 + $0x3] sm:$0x1]
    %v213 = vlaneseq
    %v214 = vshrl.u32 %v213, 7
    %v215 = vsub.s32 0, %v214
    %v216 = vrot.slane %v212, %v215
    %v221 = vunpack.c.l.b16 %v208
    %v222 = vunpack.c.l.b16 %v209
    %v223 = vunpack.c.l.b16 %v210
    %v224 = vunpack.c.l.b16 %v211
    %v225 = vpack.c.b16 %v222, %v221
    %v226 = vpack.c.b16 %v224, %v223
    %v230 = vsel %vm136, %v206, 0
    %v233 = vsel %vm136, %v207, 0
    %235 = vmatprep.subr.bf16.mxu0 0
    %236 = vmatpush1.bf16.msra.mxu0 %v225
    %237 = vmatprep.subr.bf16.mxu0 0
    %238 = vmatpush1.bf16.msra.mxu0 %v226
    %239 = vmatprep.subr.bf16.mxu0 0
    %240 = vmatpush1.bf16.msra.mxu0 0
    %241 = vmatprep.subr.bf16.mxu0 0
    %242 = vmatpush1.bf16.msra.mxu0 0
    %243 = vmatprep.subr.bf16.mxu0 0
    %244 = vmatpush1.bf16.msra.mxu0 0
    %245 = vmatprep.subr.bf16.mxu0 0
    %246 = vmatpush1.bf16.msra.mxu0 0
    %247 = vmatprep.subr.bf16.mxu0 0
    %248 = vmatpush1.bf16.msra.mxu0 0
    %249 = vmatprep.subr.bf16.mxu0 0
    %250 = vmatpush1.bf16.msra.mxu0 0
    %251 = vmatprep.subr.bf16.mxu0 0
    %252 = vmatpush1.bf16.msra.mxu0 0
    %253 = vmatprep.subr.bf16.mxu0 0
    %254 = vmatpush1.bf16.msra.mxu0 0
    %255 = vmatprep.subr.bf16.mxu0 0
    %256 = vmatpush1.bf16.msra.mxu0 0
    %257 = vmatprep.subr.bf16.mxu0 0
    %258 = vmatpush1.bf16.msra.mxu0 0
    %259 = vmatprep.subr.bf16.mxu0 0
    %260 = vmatpush1.bf16.msra.mxu0 0
    %261 = vmatprep.subr.bf16.mxu0 0
    %262 = vmatpush1.bf16.msra.mxu0 0
    %263 = vmatprep.subr.bf16.mxu0 0
    %264 = vmatpush1.bf16.msra.mxu0 0
    %265 = vmatprep.subr.bf16.mxu0 0
    %266 = vmatpush1.bf16.msra.mxu0 0
    %267 = vmatprep.mubr.bf16.mxu0 0
    %268 = vmatmul.mubr.bf16.gmra.mrb[0].mxu0 %v230
    %v269 = vpop.f32.mrb[0].mxu0
    %v270 = vadd.f32 %v216, %v269
    %v271 = vpop.f32.mrb[0].mxu0
    %v272 = vpop.f32.mrb[0].mxu0
    %v273 = vadd.f32 %v216, %v272
    %v274 = vpop.f32.mrb[0].mxu0
    %275 = vmatprep.mubr.bf16.mxu0 0
    %276 = vmatmul.mubr.bf16.gmra.mrb[0].mxu0 %v233
    %v277 = vpop.f32.mrb[0].mxu0
    %v278 = vadd.f32 %v216, %v277
    %v279 = vpop.f32.mrb[0].mxu0
    %v280 = vpop.f32.mrb[0].mxu0
    %v281 = vadd.f32 %v216, %v280
    %v282 = vpop.f32.mrb[0].mxu0
    %283 = vdwg.mxu0
    %s284 = scalar_lea.vmem %s3, 16
    %v285 = vld [vmem:[%s284] sm:$0xf]
    %v286 = vld [vmem:[%s284 + $0x4] sm:$0xf]
    %v287 = vld [vmem:[%s284 + $0x8] sm:$0xf]
    %v288 = vld [vmem:[%s284 + $0xc] sm:$0xf]
    %v289 = vld [vmem:[%s9 + $0x4] sm:$0x1]
    %v290 = vlaneseq
    %v291 = vshrl.u32 %v290, 7
    %v292 = vsub.s32 0, %v291
    %v293 = vrot.slane %v289, %v292
    %v298 = vunpack.c.l.b16 %v285
    %v299 = vunpack.c.l.b16 %v286
    %v300 = vunpack.c.l.b16 %v287
    %v301 = vunpack.c.l.b16 %v288
    %v302 = vpack.c.b16 %v299, %v298
    %v303 = vpack.c.b16 %v301, %v300
    %306 = vmatprep.subr.bf16.mxu0 0
    %307 = vmatpush1.bf16.msra.mxu0 %v302
    %308 = vmatprep.subr.bf16.mxu0 0
    %309 = vmatpush1.bf16.msra.mxu0 %v303
    %310 = vmatprep.subr.bf16.mxu0 0
    %311 = vmatpush1.bf16.msra.mxu0 0
    %312 = vmatprep.subr.bf16.mxu0 0
    %313 = vmatpush1.bf16.msra.mxu0 0
    %314 = vmatprep.subr.bf16.mxu0 0
    %315 = vmatpush1.bf16.msra.mxu0 0
    %316 = vmatprep.subr.bf16.mxu0 0
    %317 = vmatpush1.bf16.msra.mxu0 0
    %318 = vmatprep.subr.bf16.mxu0 0
    %319 = vmatpush1.bf16.msra.mxu0 0
    %320 = vmatprep.subr.bf16.mxu0 0
    %321 = vmatpush1.bf16.msra.mxu0 0
    %322 = vmatprep.subr.bf16.mxu0 0
    %323 = vmatpush1.bf16.msra.mxu0 0
    %324 = vmatprep.subr.bf16.mxu0 0
    %325 = vmatpush1.bf16.msra.mxu0 0
    %326 = vmatprep.subr.bf16.mxu0 0
    %327 = vmatpush1.bf16.msra.mxu0 0
    %328 = vmatprep.subr.bf16.mxu0 0
    %329 = vmatpush1.bf16.msra.mxu0 0
    %330 = vmatprep.subr.bf16.mxu0 0
    %331 = vmatpush1.bf16.msra.mxu0 0
    %332 = vmatprep.subr.bf16.mxu0 0
    %333 = vmatpush1.bf16.msra.mxu0 0
    %334 = vmatprep.subr.bf16.mxu0 0
    %335 = vmatpush1.bf16.msra.mxu0 0
    %336 = vmatprep.subr.bf16.mxu0 0
    %337 = vmatpush1.bf16.msra.mxu0 0
    %338 = vmatprep.mubr.bf16.mxu0 0
    %339 = vmatmul.mubr.bf16.gmra.mrb[0].mxu0 %v230
    %v340 = vpop.f32.mrb[0].mxu0
    %v341 = vadd.f32 %v293, %v340
    %v342 = vpop.f32.mrb[0].mxu0
    %v343 = vpop.f32.mrb[0].mxu0
    %v344 = vadd.f32 %v293, %v343
    %v345 = vpop.f32.mrb[0].mxu0
    %346 = vmatprep.mubr.bf16.mxu0 0
    %347 = vmatmul.mubr.bf16.gmra.mrb[0].mxu0 %v233
    %v348 = vpop.f32.mrb[0].mxu0
    %v349 = vadd.f32 %v293, %v348
    %v350 = vpop.f32.mrb[0].mxu0
    %v351 = vpop.f32.mrb[0].mxu0
    %v352 = vadd.f32 %v293, %v351
    %v353 = vpop.f32.mrb[0].mxu0
    %354 = vdwg.mxu0
    %s355 = scalar_lea.vmem %s3, 32
    %v356 = vld [vmem:[%s355] sm:$0xf]
    %v357 = vld [vmem:[%s355 + $0x4] sm:$0xf]
    %v358 = vld [vmem:[%s355 + $0x8] sm:$0xf]
    %v359 = vld [vmem:[%s355 + $0xc] sm:$0xf]
    %v360 = vld [vmem:[%s9 + $0x5] sm:$0x1]
    %v361 = vlaneseq
    %v362 = vshrl.u32 %v361, 7
    %v363 = vsub.s32 0, %v362
    %v364 = vrot.slane %v360, %v363
    %v369 = vunpack.c.l.b16 %v356
    %v370 = vunpack.c.l.b16 %v357
    %v371 = vunpack.c.l.b16 %v358
    %v372 = vunpack.c.l.b16 %v359
    %v373 = vpack.c.b16 %v370, %v369
    %v374 = vpack.c.b16 %v372, %v371
    %377 = vmatprep.subr.bf16.mxu0 0
    %378 = vmatpush1.bf16.msra.mxu0 %v373
    %379 = vmatprep.subr.bf16.mxu0 0
    %380 = vmatpush1.bf16.msra.mxu0 %v374
    %381 = vmatprep.subr.bf16.mxu0 0
    %382 = vmatpush1.bf16.msra.mxu0 0
    %383 = vmatprep.subr.bf16.mxu0 0
    %384 = vmatpush1.bf16.msra.mxu0 0
    %385 = vmatprep.subr.bf16.mxu0 0
    %386 = vmatpush1.bf16.msra.mxu0 0
    %387 = vmatprep.subr.bf16.mxu0 0
    %388 = vmatpush1.bf16.msra.mxu0 0
    %389 = vmatprep.subr.bf16.mxu0 0
    %390 = vmatpush1.bf16.msra.mxu0 0
    %391 = vmatprep.subr.bf16.mxu0 0
    %392 = vmatpush1.bf16.msra.mxu0 0
    %393 = vmatprep.subr.bf16.mxu0 0
    %394 = vmatpush1.bf16.msra.mxu0 0
    %395 = vmatprep.subr.bf16.mxu0 0
    %396 = vmatpush1.bf16.msra.mxu0 0
    %397 = vmatprep.subr.bf16.mxu0 0
    %398 = vmatpush1.bf16.msra.mxu0 0
    %399 = vmatprep.subr.bf16.mxu0 0
    %400 = vmatpush1.bf16.msra.mxu0 0
    %401 = vmatprep.subr.bf16.mxu0 0
    %402 = vmatpush1.bf16.msra.mxu0 0
    %403 = vmatprep.subr.bf16.mxu0 0
    %404 = vmatpush1.bf16.msra.mxu0 0
    %405 = vmatprep.subr.bf16.mxu0 0
    %406 = vmatpush1.bf16.msra.mxu0 0
    %407 = vmatprep.subr.bf16.mxu0 0
    %408 = vmatpush1.bf16.msra.mxu0 0
    %409 = vmatprep.mubr.bf16.mxu0 0
    %410 = vmatmul.mubr.bf16.gmra.mrb[0].mxu0 %v230
    %v411 = vpop.f32.mrb[0].mxu0
    %v412 = vadd.f32 %v364, %v411
    %v413 = vpop.f32.mrb[0].mxu0
    %v414 = vpop.f32.mrb[0].mxu0
    %v415 = vadd.f32 %v364, %v414
    %v416 = vpop.f32.mrb[0].mxu0
    %417 = vmatprep.mubr.bf16.mxu0 0
    %418 = vmatmul.mubr.bf16.gmra.mrb[0].mxu0 %v233
    %v419 = vpop.f32.mrb[0].mxu0
    %v420 = vadd.f32 %v364, %v419
    %v421 = vpop.f32.mrb[0].mxu0
    %v422 = vpop.f32.mrb[0].mxu0
    %v423 = vadd.f32 %v364, %v422
    %v424 = vpop.f32.mrb[0].mxu0
    %425 = vdwg.mxu0
    %v426 = vpack.c.bf16 %v273, %v270
    %v427 = vpack.c.bf16 %v344, %v341
    %v428 = vpack.c.bf16 %v415, %v412
    %v430 = vsel %vm136, %v426, 0
    %v433 = vsel %vm136, %v427, 0
    %435 = vmatprep.subr.bf16.mxu0 0
    %436 = vmatpush1.bf16.xpose.msra.mxu0 %v433
    %437 = vmatprep.subr.bf16.mxu0 0
    %438 = vmatpush1.bf16.xpose.msra.mxu0 0
    %439 = vmatprep.subr.bf16.mxu0 0
    %440 = vmatpush1.bf16.xpose.msra.mxu0 0
    %441 = vmatprep.subr.bf16.mxu0 0
    %442 = vmatpush1.bf16.xpose.msra.mxu0 0
    %443 = vmatprep.subr.bf16.mxu0 0
    %444 = vmatpush1.bf16.xpose.msra.mxu0 0
    %445 = vmatprep.subr.bf16.mxu0 0
    %446 = vmatpush1.bf16.xpose.msra.mxu0 0
    %447 = vmatprep.subr.bf16.mxu0 0
    %448 = vmatpush1.bf16.xpose.msra.mxu0 0
    %449 = vmatprep.subr.bf16.mxu0 0
    %450 = vmatpush1.bf16.xpose.msra.mxu0 0
    %451 = vmatprep.subr.bf16.mxu0 0
    %452 = vmatpush1.bf16.xpose.msra.mxu0 0
    %453 = vmatprep.subr.bf16.mxu0 0
    %454 = vmatpush1.bf16.xpose.msra.mxu0 0
    %455 = vmatprep.subr.bf16.mxu0 0
    %456 = vmatpush1.bf16.xpose.msra.mxu0 0
    %457 = vmatprep.subr.bf16.mxu0 0
    %458 = vmatpush1.bf16.xpose.msra.mxu0 0
    %459 = vmatprep.subr.bf16.mxu0 0
    %460 = vmatpush1.bf16.xpose.msra.mxu0 0
    %461 = vmatprep.subr.bf16.mxu0 0
    %462 = vmatpush1.bf16.xpose.msra.mxu0 0
    %463 = vmatprep.subr.bf16.mxu0 0
    %464 = vmatpush1.bf16.xpose.msra.mxu0 0
    %465 = vmatprep.subr.bf16.mxu0 0
    %466 = vmatpush1.bf16.xpose.msra.mxu0 0
    %467 = vmatprep.mubr.bf16.mxu0 0
    %468 = vmatmul.mubr.bf16.gmra.mrb[0].mxu0 %v430
    %v469 = vpop.f32.mrb[0].mxu0
    %v470 = vadd.f32 0.0, %v469
    %v471 = vpop.f32.mrb[0].mxu0
    %v472 = vpop.f32.mrb[0].mxu0
    %v473 = vadd.f32 0.0, %v472
    %v474 = vpop.f32.mrb[0].mxu0
    %475 = vdwg.mxu0
    %v476 = vmul.f32 %v470, 0.17677669
    %v477 = vmul.f32 %v473, 0.17677669
    %vm478 = vcmask 130048
    %v479 = vsel %vm478, %v476, -inf
    %480 = vmax.xlane.f32.xlu0 %v479
    %v481 = vpop.xlane.xlu0 %480
    %v482 = vsel %vm478, %v477, -inf
    %483 = vmax.xlane.f32.xlu0 %v482
    %v484 = vpop.xlane.xlu0 %483
    %v485 = vsub.f32 %v476, %v481
    %v486 = vsub.f32 %v477, %v484
    %v487 = vmul.f32 %v485, 1.442695
    %v488 = vpow.pop %v487
    %v489 = vmul.f32 %v486, 1.442695
    %v490 = vpow.pop %v489
    %v491 = vsel %vm478, %v488, 0.0
    %492 = vadd.xlane.f32.xlu0 %v491
    %v493 = vpop.xlane.xlu0 %492
    %v494 = vsel %vm478, %v490, 0.0
    %495 = vadd.xlane.f32.xlu0 %v494
    %v496 = vpop.xlane.xlu0 %495
    %v497 = vrcp.pop %v493
    %v498 = vmul.f32 %v488, %v497
    %v499 = vrcp.pop %v496
    %v500 = vmul.f32 %v490, %v499
    %v501 = vpack.c.bf16 %v500, %v498
    %v503 = vsel %vm478, %v501, 0
    %505 = vmatprep.subr.bf16.mxu0 0
    %506 = vmatpush1.bf16.msra.mxu0 %v428
    %507 = vmatprep.subr.bf16.mxu0 0
    %508 = vmatpush1.bf16.msra.mxu0 0
    %509 = vmatprep.subr.bf16.mxu0 0
    %510 = vmatpush1.bf16.msra.mxu0 0
    %511 = vmatprep.subr.bf16.mxu0 0
    %512 = vmatpush1.bf16.msra.mxu0 0
    %513 = vmatprep.subr.bf16.mxu0 0
    %514 = vmatpush1.bf16.msra.mxu0 0
    %515 = vmatprep.subr.bf16.mxu0 0
    %516 = vmatpush1.bf16.msra.mxu0 0
    %517 = vmatprep.subr.bf16.mxu0 0
    %518 = vmatpush1.bf16.msra.mxu0 0
    %519 = vmatprep.subr.bf16.mxu0 0
    %520 = vmatpush1.bf16.msra.mxu0 0
    %521 = vmatprep.subr.bf16.mxu0 0
    %522 = vmatpush1.bf16.msra.mxu0 0
    %523 = vmatprep.subr.bf16.mxu0 0
    %524 = vmatpush1.bf16.msra.mxu0 0
    %525 = vmatprep.subr.bf16.mxu0 0
    %526 = vmatpush1.bf16.msra.mxu0 0
    %527 = vmatprep.subr.bf16.mxu0 0
    %528 = vmatpush1.bf16.msra.mxu0 0
    %529 = vmatprep.subr.bf16.mxu0 0
    %530 = vmatpush1.bf16.msra.mxu0 0
    %531 = vmatprep.subr.bf16.mxu0 0
    %532 = vmatpush1.bf16.msra.mxu0 0
    %533 = vmatprep.subr.bf16.mxu0 0
    %534 = vmatpush1.bf16.msra.mxu0 0
    %535 = vmatprep.subr.bf16.mxu0 0
    %536 = vmatpush1.bf16.msra.mxu0 0
    %537 = vmatprep.mubr.bf16.mxu0 0
    %538 = vmatmul.mubr.bf16.gmra.mrb[0].mxu0 %v503
    %v539 = vpop.f32.mrb[0].mxu0
    %v540 = vadd.f32 0.0, %v539
    %v541 = vpop.f32.mrb[0].mxu0
    %v542 = vpop.f32.mrb[0].mxu0
    %v543 = vadd.f32 0.0, %v542
    %v544 = vpop.f32.mrb[0].mxu0
    %545 = vdwg.mxu0
    %v546 = vpack.c.bf16 %v281, %v278
    %v547 = vpack.c.bf16 %v352, %v349
    %v548 = vpack.c.bf16 %v423, %v420
    %v550 = vsel %vm136, %v546, 0
    %v553 = vsel %vm136, %v547, 0
    %555 = vmatprep.subr.bf16.mxu0 0
    %556 = vmatpush1.bf16.xpose.msra.mxu0 %v553
    %557 = vmatprep.subr.bf16.mxu0 0
    %558 = vmatpush1.bf16.xpose.msra.mxu0 0
    %559 = vmatprep.subr.bf16.mxu0 0
    %560 = vmatpush1.bf16.xpose.msra.mxu0 0
    %561 = vmatprep.subr.bf16.mxu0 0
    %562 = vmatpush1.bf16.xpose.msra.mxu0 0
    %563 = vmatprep.subr.bf16.mxu0 0
    %564 = vmatpush1.bf16.xpose.msra.mxu0 0
    %565 = vmatprep.subr.bf16.mxu0 0
    %566 = vmatpush1.bf16.xpose.msra.mxu0 0
    %567 = vmatprep.subr.bf16.mxu0 0
    %568 = vmatpush1.bf16.xpose.msra.mxu0 0
    %569 = vmatprep.subr.bf16.mxu0 0
    %570 = vmatpush1.bf16.xpose.msra.mxu0 0
    %571 = vmatprep.subr.bf16.mxu0 0
    %572 = vmatpush1.bf16.xpose.msra.mxu0 0
    %573 = vmatprep.subr.bf16.mxu0 0
    %574 = vmatpush1.bf16.xpose.msra.mxu0 0
    %575 = vmatprep.subr.bf16.mxu0 0
    %576 = vmatpush1.bf16.xpose.msra.mxu0 0
    %577 = vmatprep.subr.bf16.mxu0 0
    %578 = vmatpush1.bf16.xpose.msra.mxu0 0
    %579 = vmatprep.subr.bf16.mxu0 0
    %580 = vmatpush1.bf16.xpose.msra.mxu0 0
    %581 = vmatprep.subr.bf16.mxu0 0
    %582 = vmatpush1.bf16.xpose.msra.mxu0 0
    %583 = vmatprep.subr.bf16.mxu0 0
    %584 = vmatpush1.bf16.xpose.msra.mxu0 0
    %585 = vmatprep.subr.bf16.mxu0 0
    %586 = vmatpush1.bf16.xpose.msra.mxu0 0
    %587 = vmatprep.mubr.bf16.mxu0 0
    %588 = vmatmul.mubr.bf16.gmra.mrb[0].mxu0 %v550
    %v589 = vpop.f32.mrb[0].mxu0
    %v590 = vadd.f32 0.0, %v589
    %v591 = vpop.f32.mrb[0].mxu0
    %v592 = vpop.f32.mrb[0].mxu0
    %v593 = vadd.f32 0.0, %v592
    %v594 = vpop.f32.mrb[0].mxu0
    %595 = vdwg.mxu0
    %v596 = vmul.f32 %v590, 0.17677669
    %v597 = vmul.f32 %v593, 0.17677669
    %v598 = vsel %vm478, %v596, -inf
    %599 = vmax.xlane.f32.xlu0 %v598
    %v600 = vpop.xlane.xlu0 %599
    %v601 = vsel %vm478, %v597, -inf
    %602 = vmax.xlane.f32.xlu0 %v601
    %v603 = vpop.xlane.xlu0 %602
    %v604 = vsub.f32 %v596, %v600
    %v605 = vsub.f32 %v597, %v603
    %v606 = vmul.f32 %v604, 1.442695
    %v607 = vpow.pop %v606
    %v608 = vmul.f32 %v605, 1.442695
    %v609 = vpow.pop %v608
    %v610 = vsel %vm478, %v607, 0.0
    %611 = vadd.xlane.f32.xlu0 %v610
    %v612 = vpop.xlane.xlu0 %611
    %v613 = vsel %vm478, %v609, 0.0
    %614 = vadd.xlane.f32.xlu0 %v613
    %v615 = vpop.xlane.xlu0 %614
    %v616 = vrcp.pop %v612
    %v617 = vmul.f32 %v607, %v616
    %v618 = vrcp.pop %v615
    %v619 = vmul.f32 %v609, %v618
    %v620 = vpack.c.bf16 %v619, %v617
    %v622 = vsel %vm478, %v620, 0
    %624 = vmatprep.subr.bf16.mxu0 0
    %625 = vmatpush1.bf16.msra.mxu0 %v548
    %626 = vmatprep.subr.bf16.mxu0 0
    %627 = vmatpush1.bf16.msra.mxu0 0
    %628 = vmatprep.subr.bf16.mxu0 0
    %629 = vmatpush1.bf16.msra.mxu0 0
    %630 = vmatprep.subr.bf16.mxu0 0
    %631 = vmatpush1.bf16.msra.mxu0 0
    %632 = vmatprep.subr.bf16.mxu0 0
    %633 = vmatpush1.bf16.msra.mxu0 0
    %634 = vmatprep.subr.bf16.mxu0 0
    %635 = vmatpush1.bf16.msra.mxu0 0
    %636 = vmatprep.subr.bf16.mxu0 0
    %637 = vmatpush1.bf16.msra.mxu0 0
    %638 = vmatprep.subr.bf16.mxu0 0
    %639 = vmatpush1.bf16.msra.mxu0 0
    %640 = vmatprep.subr.bf16.mxu0 0
    %641 = vmatpush1.bf16.msra.mxu0 0
    %642 = vmatprep.subr.bf16.mxu0 0
    %643 = vmatpush1.bf16.msra.mxu0 0
    %644 = vmatprep.subr.bf16.mxu0 0
    %645 = vmatpush1.bf16.msra.mxu0 0
    %646 = vmatprep.subr.bf16.mxu0 0
    %647 = vmatpush1.bf16.msra.mxu0 0
    %648 = vmatprep.subr.bf16.mxu0 0
    %649 = vmatpush1.bf16.msra.mxu0 0
    %650 = vmatprep.subr.bf16.mxu0 0
    %651 = vmatpush1.bf16.msra.mxu0 0
    %652 = vmatprep.subr.bf16.mxu0 0
    %653 = vmatpush1.bf16.msra.mxu0 0
    %654 = vmatprep.subr.bf16.mxu0 0
    %655 = vmatpush1.bf16.msra.mxu0 0
    %656 = vmatprep.mubr.bf16.mxu0 0
    %657 = vmatmul.mubr.bf16.gmra.mrb[0].mxu0 %v622
    %v658 = vpop.f32.mrb[0].mxu0
    %v659 = vadd.f32 0.0, %v658
    %v660 = vpop.f32.mrb[0].mxu0
    %v661 = vpop.f32.mrb[0].mxu0
    %v662 = vadd.f32 0.0, %v661
    %v663 = vpop.f32.mrb[0].mxu0
    %664 = vdwg.mxu0
    %v665 = vld [vmem:[%s4] sm:$0xf]
    %v666 = vld [vmem:[%s4 + $0x4] sm:$0xf]
    %v667 = vld [vmem:[%s4 + $0x8] sm:$0xf]
    %v668 = vld [vmem:[%s4 + $0xc] sm:$0xf]
    %v669 = vpack.c.bf16 %v543, %v540
    %v670 = vpack.c.bf16 %v662, %v659
    %v671 = vld [vmem:[%s9 + $0x6] sm:$0x1]
    %v672 = vlaneseq
    %v673 = vshrl.u32 %v672, 7
    %v674 = vsub.s32 0, %v673
    %v675 = vrot.slane %v671, %v674
    %v680 = vunpack.c.l.b16 %v665
    %v681 = vunpack.c.l.b16 %v666
    %v682 = vunpack.c.l.b16 %v667
    %v683 = vunpack.c.l.b16 %v668
    %v684 = vpack.c.b16 %v681, %v680
    %v685 = vpack.c.b16 %v683, %v682
    %v689 = vsel %vm136, %v669, 0
    %v692 = vsel %vm136, %v670, 0
    %694 = vmatprep.subr.bf16.mxu0 0
    %695 = vmatpush1.bf16.msra.mxu0 %v684
    %696 = vmatprep.subr.bf16.mxu0 0
    %697 = vmatpush1.bf16.msra.mxu0 %v685
    %698 = vmatprep.subr.bf16.mxu0 0
    %699 = vmatpush1.bf16.msra.mxu0 0
    %700 = vmatprep.subr.bf16.mxu0 0
    %701 = vmatpush1.bf16.msra.mxu0 0
    %702 = vmatprep.subr.bf16.mxu0 0
    %703 = vmatpush1.bf16.msra.mxu0 0
    %704 = vmatprep.subr.bf16.mxu0 0
    %705 = vmatpush1.bf16.msra.mxu0 0
    %706 = vmatprep.subr.bf16.mxu0 0
    %707 = vmatpush1.bf16.msra.mxu0 0
    %708 = vmatprep.subr.bf16.mxu0 0
    %709 = vmatpush1.bf16.msra.mxu0 0
    %710 = vmatprep.subr.bf16.mxu0 0
    %711 = vmatpush1.bf16.msra.mxu0 0
    %712 = vmatprep.subr.bf16.mxu0 0
    %713 = vmatpush1.bf16.msra.mxu0 0
    %714 = vmatprep.subr.bf16.mxu0 0
    %715 = vmatpush1.bf16.msra.mxu0 0
    %716 = vmatprep.subr.bf16.mxu0 0
    %717 = vmatpush1.bf16.msra.mxu0 0
    %718 = vmatprep.subr.bf16.mxu0 0
    %719 = vmatpush1.bf16.msra.mxu0 0
    %720 = vmatprep.subr.bf16.mxu0 0
    %721 = vmatpush1.bf16.msra.mxu0 0
    %722 = vmatprep.subr.bf16.mxu0 0
    %723 = vmatpush1.bf16.msra.mxu0 0
    %724 = vmatprep.subr.bf16.mxu0 0
    %725 = vmatpush1.bf16.msra.mxu0 0
    %726 = vmatprep.mubr.bf16.mxu0 0
    %727 = vmatmul.mubr.bf16.gmra.mrb[0].mxu0 %v689
    %v728 = vpop.f32.mrb[0].mxu0
    %v729 = vadd.f32 %v675, %v728
    %v730 = vpop.f32.mrb[0].mxu0
    %v731 = vpop.f32.mrb[0].mxu0
    %v732 = vadd.f32 %v675, %v731
    %v733 = vpop.f32.mrb[0].mxu0
    %734 = vmatprep.mubr.bf16.mxu0 0
    %735 = vmatmul.mubr.bf16.gmra.mrb[0].mxu0 %v692
    %v736 = vpop.f32.mrb[0].mxu0
    %v737 = vadd.f32 %v675, %v736
    %v738 = vpop.f32.mrb[0].mxu0
    %v739 = vpop.f32.mrb[0].mxu0
    %v740 = vadd.f32 %v675, %v739
    %v741 = vpop.f32.mrb[0].mxu0
    %742 = vdwg.mxu0
    %v743 = vadd.f32 %v130, %v729
    %v744 = vadd.f32 %v131, %v732
    %v745 = vadd.f32 %v132, %v737
    %v746 = vadd.f32 %v133, %v740
    %v747 = vld [vmem:[%s9 + $0x7] sm:$0x1]
    %v748 = vld [vmem:[%s9 + $0x8] sm:$0x1]
    %v749 = vsel %vm136, %v743, 0.0
    %750 = vadd.xlane.f32.xlu0 %v749
    %v751 = vpop.xlane.xlu0 %750
    %v752 = vsel %vm136, %v744, 0.0
    %753 = vadd.xlane.f32.xlu0 %v752
    %v754 = vpop.xlane.xlu0 %753
    %v755 = vsel %vm136, %v745, 0.0
    %756 = vadd.xlane.f32.xlu0 %v755
    %v757 = vpop.xlane.xlu0 %756
    %v758 = vsel %vm136, %v746, 0.0
    %759 = vadd.xlane.f32.xlu0 %v758
    %v760 = vpop.xlane.xlu0 %759
    %v761 = vmul.f32 %v751, %v149
    %v762 = vmul.f32 %v754, %v149
    %v763 = vmul.f32 %v757, %v149
    %v764 = vmul.f32 %v760, %v149
    %v765 = vsub.f32 %v743, %v761
    %v766 = vsub.f32 %v744, %v762
    %v767 = vsub.f32 %v745, %v763
    %v768 = vsub.f32 %v746, %v764
    %v769 = vmul.f32 %v765, %v765
    %v770 = vmul.f32 %v766, %v766
    %v771 = vmul.f32 %v767, %v767
    %v772 = vmul.f32 %v768, %v768
    %v773 = vsel %vm136, %v769, 0.0
    %774 = vadd.xlane.f32.xlu0 %v773
    %v775 = vpop.xlane.xlu0 %774
    %v776 = vsel %vm136, %v770, 0.0
    %777 = vadd.xlane.f32.xlu0 %v776
    %v778 = vpop.xlane.xlu0 %777
    %v779 = vsel %vm136, %v771, 0.0
    %780 = vadd.xlane.f32.xlu0 %v779
    %v781 = vpop.xlane.xlu0 %780
    %v782 = vsel %vm136, %v772, 0.0
    %783 = vadd.xlane.f32.xlu0 %v782
    %v784 = vpop.xlane.xlu0 %783
    %v785 = vmul.f32 %v775, %v149
    %v786 = vmul.f32 %v778, %v149
    %v787 = vmul.f32 %v781, %v149
    %v788 = vmul.f32 %v784, %v149
    %v789 = vadd.f32 %v785, 1e-06
    %v790 = vadd.f32 %v786, 1e-06
    %v791 = vadd.f32 %v787, 1e-06
    %v792 = vadd.f32 %v788, 1e-06
    %v793 = vrsqrt.pop %v789
    %v794 = vrsqrt.pop %v790
    %v795 = vrsqrt.pop %v791
    %v796 = vrsqrt.pop %v792
    %v797 = vmul.f32 %v765, %v793
    %v798 = vmul.f32 %v766, %v794
    %v799 = vmul.f32 %v767, %v795
    %v800 = vmul.f32 %v768, %v796
    %v801 = vlaneseq
    %v802 = vshrl.u32 %v801, 7
    %v803 = vsub.s32 0, %v802
    %v804 = vrot.slane %v747, %v803
    %v805 = vmul.f32 %v797, %v804
    %v806 = vmul.f32 %v798, %v804
    %v807 = vmul.f32 %v799, %v804
    %v808 = vmul.f32 %v800, %v804
    %v809 = vlaneseq
    %v810 = vshrl.u32 %v809, 7
    %v811 = vsub.s32 0, %v810
    %v812 = vrot.slane %v748, %v811
    %v813 = vadd.f32 %v805, %v812
    %v814 = vadd.f32 %v806, %v812
    %v815 = vadd.f32 %v807, %v812
    %v816 = vadd.f32 %v808, %v812
    %v817 = vld [vmem:[%s5] sm:$0xf]
    %v818 = vld [vmem:[%s5 + $0x4] sm:$0xf]
    %v819 = vld [vmem:[%s5 + $0x8] sm:$0xf]
    %v820 = vld [vmem:[%s5 + $0xc] sm:$0xf]
    %v821 = vpack.c.bf16 %v814, %v813
    %v822 = vpack.c.bf16 %v816, %v815
    %v823 = vld [vmem:[%s9 + $0x9] sm:$0x1]
    %v824 = vlaneseq
    %v825 = vshrl.u32 %v824, 7
    %v826 = vsub.s32 0, %v825
    %v827 = vrot.slane %v823, %v826
    %v832 = vunpack.c.l.b16 %v817
    %v833 = vunpack.c.l.b16 %v818
    %v834 = vunpack.c.l.b16 %v819
    %v835 = vunpack.c.l.b16 %v820
    %v836 = vpack.c.b16 %v833, %v832
    %v837 = vpack.c.b16 %v835, %v834
    %v841 = vsel %vm136, %v821, 0
    %v844 = vsel %vm136, %v822, 0
    %846 = vmatprep.subr.bf16.mxu0 0
    %847 = vmatpush1.bf16.msra.mxu0 %v836
    %848 = vmatprep.subr.bf16.mxu0 0
    %849 = vmatpush1.bf16.msra.mxu0 %v837
    %850 = vmatprep.subr.bf16.mxu0 0
    %851 = vmatpush1.bf16.msra.mxu0 0
    %852 = vmatprep.subr.bf16.mxu0 0
    %853 = vmatpush1.bf16.msra.mxu0 0
    %854 = vmatprep.subr.bf16.mxu0 0
    %855 = vmatpush1.bf16.msra.mxu0 0
    %856 = vmatprep.subr.bf16.mxu0 0
    %857 = vmatpush1.bf16.msra.mxu0 0
    %858 = vmatprep.subr.bf16.mxu0 0
    %859 = vmatpush1.bf16.msra.mxu0 0
    %860 = vmatprep.subr.bf16.mxu0 0
    %861 = vmatpush1.bf16.msra.mxu0 0
    %862 = vmatprep.subr.bf16.mxu0 0
    %863 = vmatpush1.bf16.msra.mxu0 0
    %864 = vmatprep.subr.bf16.mxu0 0
    %865 = vmatpush1.bf16.msra.mxu0 0
    %866 = vmatprep.subr.bf16.mxu0 0
    %867 = vmatpush1.bf16.msra.mxu0 0
    %868 = vmatprep.subr.bf16.mxu0 0
    %869 = vmatpush1.bf16.msra.mxu0 0
    %870 = vmatprep.subr.bf16.mxu0 0
    %871 = vmatpush1.bf16.msra.mxu0 0
    %872 = vmatprep.subr.bf16.mxu0 0
    %873 = vmatpush1.bf16.msra.mxu0 0
    %874 = vmatprep.subr.bf16.mxu0 0
    %875 = vmatpush1.bf16.msra.mxu0 0
    %876 = vmatprep.subr.bf16.mxu0 0
    %877 = vmatpush1.bf16.msra.mxu0 0
    %878 = vmatprep.mubr.bf16.mxu0 0
    %879 = vmatmul.mubr.bf16.gmra.mrb[0].mxu0 %v841
    %v880 = vpop.f32.mrb[0].mxu0
    %v881 = vadd.f32 %v827, %v880
    %v882 = vpop.f32.mrb[0].mxu0
    %v883 = vpop.f32.mrb[0].mxu0
    %v884 = vadd.f32 %v827, %v883
    %v885 = vpop.f32.mrb[0].mxu0
    %886 = vmatprep.mubr.bf16.mxu0 0
    %887 = vmatmul.mubr.bf16.gmra.mrb[0].mxu0 %v844
    %v888 = vpop.f32.mrb[0].mxu0
    %v889 = vadd.f32 %v827, %v888
    %v890 = vpop.f32.mrb[0].mxu0
    %v891 = vpop.f32.mrb[0].mxu0
    %v892 = vadd.f32 %v827, %v891
    %v893 = vpop.f32.mrb[0].mxu0
    %894 = vdwg.mxu0
    %v895 = vmul.f32 %v881, %v881
    %v896 = vmul.f32 %v884, %v884
    %v897 = vmul.f32 %v889, %v889
    %v898 = vmul.f32 %v892, %v892
    %v899 = vmul.f32 %v881, %v895
    %v900 = vmul.f32 %v884, %v896
    %v901 = vmul.f32 %v889, %v897
    %v902 = vmul.f32 %v892, %v898
    %v903 = vmul.f32 %v899, 0.044715
    %v904 = vmul.f32 %v900, 0.044715
    %v905 = vmul.f32 %v901, 0.044715
    %v906 = vmul.f32 %v902, 0.044715
    %v907 = vadd.f32 %v881, %v903
    %v908 = vadd.f32 %v884, %v904
    %v909 = vadd.f32 %v889, %v905
    %v910 = vadd.f32 %v892, %v906
    %v911 = vmul.f32 %v907, 0.7978846
    %v912 = vmul.f32 %v908, 0.7978846
    %v913 = vmul.f32 %v909, 0.7978846
    %v914 = vmul.f32 %v910, 0.7978846
    %v915 = vtanh.pop %v911
    %v916 = vtanh.pop %v912
    %v917 = vtanh.pop %v913
    %v918 = vtanh.pop %v914
    %v919 = vadd.f32 %v915, 1.0
    %v920 = vadd.f32 %v916, 1.0
    %v921 = vadd.f32 %v917, 1.0
    %v922 = vadd.f32 %v918, 1.0
    %v923 = vmul.f32 %v919, 0.5
    %v924 = vmul.f32 %v920, 0.5
    %v925 = vmul.f32 %v921, 0.5
    %v926 = vmul.f32 %v922, 0.5
    %v927 = vmul.f32 %v881, %v923
    %v928 = vmul.f32 %v884, %v924
    %v929 = vmul.f32 %v889, %v925
    %v930 = vmul.f32 %v892, %v926
    %v931 = vld [vmem:[%s6] sm:$0xf]
    %v932 = vld [vmem:[%s6 + $0x4] sm:$0xf]
    %v933 = vld [vmem:[%s6 + $0x8] sm:$0xf]
    %v934 = vld [vmem:[%s6 + $0xc] sm:$0xf]
    %v935 = vld [vmem:[%s6 + $0x10] sm:$0xf]
    %v936 = vld [vmem:[%s6 + $0x14] sm:$0xf]
    %v937 = vld [vmem:[%s6 + $0x18] sm:$0xf]
    %v938 = vld [vmem:[%s6 + $0x1c] sm:$0xf]
    %v939 = vld [vmem:[%s6 + $0x20] sm:$0xf]
    %v940 = vld [vmem:[%s6 + $0x24] sm:$0xf]
    %v941 = vld [vmem:[%s6 + $0x28] sm:$0xf]
    %v942 = vld [vmem:[%s6 + $0x2c] sm:$0xf]
    %v943 = vld [vmem:[%s6 + $0x30] sm:$0xf]
    %v944 = vld [vmem:[%s6 + $0x34] sm:$0xf]
    %v945 = vld [vmem:[%s6 + $0x38] sm:$0xf]
    %v946 = vld [vmem:[%s6 + $0x3c] sm:$0xf]
    %v947 = vpack.c.bf16 %v928, %v927
    %v948 = vpack.c.bf16 %v930, %v929
    %v949 = vld [vmem:[%s9 + $0xa] sm:$0x1]
    %v950 = vlaneseq
    %v951 = vshrl.u32 %v950, 7
    %v952 = vsub.s32 0, %v951
    %v953 = vrot.slane %v949, %v952
    %v970 = vunpack.c.l.b16 %v931
    %v971 = vunpack.c.l.b16 %v932
    %v972 = vunpack.c.l.b16 %v933
    %v973 = vunpack.c.l.b16 %v934
    %v974 = vunpack.c.l.b16 %v935
    %v975 = vunpack.c.l.b16 %v936
    %v976 = vunpack.c.l.b16 %v937
    %v977 = vunpack.c.l.b16 %v938
    %v978 = vunpack.c.l.b16 %v939
    %v979 = vunpack.c.l.b16 %v940
    %v980 = vunpack.c.l.b16 %v941
    %v981 = vunpack.c.l.b16 %v942
    %v982 = vunpack.c.l.b16 %v943
    %v983 = vunpack.c.l.b16 %v944
    %v984 = vunpack.c.l.b16 %v945
    %v985 = vunpack.c.l.b16 %v946
    %v986 = vpack.c.b16 %v971, %v970
    %v987 = vpack.c.b16 %v973, %v972
    %v988 = vpack.c.b16 %v975, %v974
    %v989 = vpack.c.b16 %v977, %v976
    %v990 = vpack.c.b16 %v979, %v978
    %v991 = vpack.c.b16 %v981, %v980
    %v992 = vpack.c.b16 %v983, %v982
    %v993 = vpack.c.b16 %v985, %v984
    %1002 = vmatprep.subr.bf16.mxu0 0
    %1003 = vmatpush1.bf16.msra.mxu0 %v986
    %1004 = vmatprep.subr.bf16.mxu0 0
    %1005 = vmatpush1.bf16.msra.mxu0 %v987
    %1006 = vmatprep.subr.bf16.mxu0 0
    %1007 = vmatpush1.bf16.msra.mxu0 %v988
    %1008 = vmatprep.subr.bf16.mxu0 0
    %1009 = vmatpush1.bf16.msra.mxu0 %v989
    %1010 = vmatprep.subr.bf16.mxu0 0
    %1011 = vmatpush1.bf16.msra.mxu0 %v990
    %1012 = vmatprep.subr.bf16.mxu0 0
    %1013 = vmatpush1.bf16.msra.mxu0 %v991
    %1014 = vmatprep.subr.bf16.mxu0 0
    %1015 = vmatpush1.bf16.msra.mxu0 %v992
    %1016 = vmatprep.subr.bf16.mxu0 0
    %1017 = vmatpush1.bf16.msra.mxu0 %v993
    %1018 = vmatprep.subr.bf16.mxu0 0
    %1019 = vmatpush1.bf16.msra.mxu0 0
    %1020 = vmatprep.subr.bf16.mxu0 0
    %1021 = vmatpush1.bf16.msra.mxu0 0
    %1022 = vmatprep.subr.bf16.mxu0 0
    %1023 = vmatpush1.bf16.msra.mxu0 0
    %1024 = vmatprep.subr.bf16.mxu0 0
    %1025 = vmatpush1.bf16.msra.mxu0 0
    %1026 = vmatprep.subr.bf16.mxu0 0
    %1027 = vmatpush1.bf16.msra.mxu0 0
    %1028 = vmatprep.subr.bf16.mxu0 0
    %1029 = vmatpush1.bf16.msra.mxu0 0
    %1030 = vmatprep.subr.bf16.mxu0 0
    %1031 = vmatpush1.bf16.msra.mxu0 0
    %1032 = vmatprep.subr.bf16.mxu0 0
    %1033 = vmatpush1.bf16.msra.mxu0 0
    %1034 = vmatprep.mubr.bf16.mxu0 0
    %1035 = vmatmul.mubr.bf16.gmra.mrb[0].mxu0 %v947
    %v1036 = vpop.f32.mrb[0].mxu0
    %v1037 = vadd.f32 %v953, %v1036
    %v1038 = vpop.f32.mrb[0].mxu0
    %v1039 = vpop.f32.mrb[0].mxu0
    %v1040 = vadd.f32 %v953, %v1039
    %v1041 = vpop.f32.mrb[0].mxu0
    %1042 = vmatprep.mubr.bf16.mxu0 0
    %1043 = vmatmul.mubr.bf16.gmra.mrb[0].mxu0 %v948
    %v1044 = vpop.f32.mrb[0].mxu0
    %v1045 = vadd.f32 %v953, %v1044
    %v1046 = vpop.f32.mrb[0].mxu0
    %v1047 = vpop.f32.mrb[0].mxu0
    %v1048 = vadd.f32 %v953, %v1047
    %v1049 = vpop.f32.mrb[0].mxu0
    %1050 = vdwg.mxu0
    %v1051 = vadd.f32 %v743, %v1037
    %v1052 = vadd.f32 %v744, %v1040
    %v1053 = vadd.f32 %v745, %v1045
    %v1054 = vadd.f32 %v746, %v1048
    %v1055 = vsel %vm136, %v1051, 0.0
    %v1056 = vsel %vm136, %v1052, 0.0
    %v1057 = vadd.f32 %v1055, %v1056
    %v1058 = vrot.slane %v1057, 4
    %v1059 = vadd.f32 %v1057, %v1058
    %v1060 = vrot.slane %v1059, 2
    %v1061 = vadd.f32 %v1059, %v1060
    %v1062 = vrot.slane %v1061, 1
    %v1063 = vadd.f32 %v1061, %v1062
    %v1064 = vrcp.pop 16.0
    %v1065 = vmul.f32 %v1063, %v1064
    %v1066 = vsel %vm136, %v1053, 0.0
    %v1067 = vsel %vm136, %v1054, 0.0
    %v1068 = vadd.f32 %v1066, %v1067
    %v1069 = vrot.slane %v1068, 4
    %v1070 = vadd.f32 %v1068, %v1069
    %v1071 = vrot.slane %v1070, 2
    %v1072 = vadd.f32 %v1070, %v1071
    %v1073 = vrot.slane %v1072, 1
    %v1074 = vadd.f32 %v1072, %v1073
    %v1075 = vmul.f32 %v1074, %v1064
    %vm1076 = vcmask 1040384
    %v1077 = vsel %vm1076, %v1065, %v1075
    %v1078 = vld [vmem:[%s7] sm:$0xf]
    %v1079 = vld [vmem:[%s7 + $0x4] sm:$0xf]
    %v1080 = vld [vmem:[%s7 + $0x8] sm:$0xf]
    %v1081 = vld [vmem:[%s7 + $0xc] sm:$0xf]
    %v1082 = vpack.c.bf16 %v1077, %v1077
    %v1083 = vld [vmem:[%s9 + $0xb] sm:$0x1]
    %v1084 = vlaneseq
    %v1085 = vshrl.u32 %v1084, 7
    %v1086 = vsub.s32 0, %v1085
    %v1087 = vrot.slane %v1083, %v1086
    %v1092 = vunpack.c.l.b16 %v1078
    %v1093 = vunpack.c.l.b16 %v1079
    %v1094 = vunpack.c.l.b16 %v1080
    %v1095 = vunpack.c.l.b16 %v1081
    %v1096 = vpack.c.b16 %v1093, %v1092
    %v1097 = vpack.c.b16 %v1095, %v1094
    %v1101 = vsel %vm136, %v1082, 0
    %1103 = vmatprep.subr.bf16.mxu0 0
    %1104 = vmatpush1.bf16.msra.mxu0 %v1096
    %1105 = vmatprep.subr.bf16.mxu0 0
    %1106 = vmatpush1.bf16.msra.mxu0 %v1097
    %1107 = vmatprep.subr.bf16.mxu0 0
    %1108 = vmatpush1.bf16.msra.mxu0 0
    %1109 = vmatprep.subr.bf16.mxu0 0
    %1110 = vmatpush1.bf16.msra.mxu0 0
    %1111 = vmatprep.subr.bf16.mxu0 0
    %1112 = vmatpush1.bf16.msra.mxu0 0
    %1113 = vmatprep.subr.bf16.mxu0 0
    %1114 = vmatpush1.bf16.msra.mxu0 0
    %1115 = vmatprep.subr.bf16.mxu0 0
    %1116 = vmatpush1.bf16.msra.mxu0 0
    %1117 = vmatprep.subr.bf16.mxu0 0
    %1118 = vmatpush1.bf16.msra.mxu0 0
    %1119 = vmatprep.subr.bf16.mxu0 0
    %1120 = vmatpush1.bf16.msra.mxu0 0
    %1121 = vmatprep.subr.bf16.mxu0 0
    %1122 = vmatpush1.bf16.msra.mxu0 0
    %1123 = vmatprep.subr.bf16.mxu0 0
    %1124 = vmatpush1.bf16.msra.mxu0 0
    %1125 = vmatprep.subr.bf16.mxu0 0
    %1126 = vmatpush1.bf16.msra.mxu0 0
    %1127 = vmatprep.subr.bf16.mxu0 0
    %1128 = vmatpush1.bf16.msra.mxu0 0
    %1129 = vmatprep.subr.bf16.mxu0 0
    %1130 = vmatpush1.bf16.msra.mxu0 0
    %1131 = vmatprep.subr.bf16.mxu0 0
    %1132 = vmatpush1.bf16.msra.mxu0 0
    %1133 = vmatprep.subr.bf16.mxu0 0
    %1134 = vmatpush1.bf16.msra.mxu0 0
    %1135 = vmatprep.mubr.bf16.mxu0 0
    %1136 = vmatmul.mubr.bf16.gmra.mrb[0].mxu0 %v1101
    %v1137 = vpop.f32.mrb[0].mxu0
    %v1138 = vadd.f32 %v1087, %v1137
    %v1139 = vpop.f32.mrb[0].mxu0
    %v1140 = vpop.f32.mrb[0].mxu0
    %v1141 = vpop.f32.mrb[0].mxu0
    %1142 = vdwg.mxu0
    %v1143 = vld [vmem:[%s9 + $0xe] sm:$0x1]
    %v1144 = vlaneseq
    %v1145 = vshrl.u32 %v1144, 7
    %v1146 = vsub.s32 0, %v1145
    %v1147 = vrot.slane %v1143, %v1146
    %v1148 = vsub.f32 %v1138, %v1147
    %v1149 = vld [vmem:[%s9 + $0xf] sm:$0x1]
    %v1150 = vadd.f32 %v1149, 1e-05
    %v1151 = vrsqrt.pop %v1150
    %v1152 = vlaneseq
    %v1153 = vshrl.u32 %v1152, 7
    %v1154 = vsub.s32 0, %v1153
    %v1155 = vrot.slane %v1151, %v1154
    %v1156 = vmul.f32 %v1148, %v1155
    %v1157 = vld [vmem:[%s9 + $0xc] sm:$0x1]
    %v1158 = vlaneseq
    %v1159 = vshrl.u32 %v1158, 7
    %v1160 = vsub.s32 0, %v1159
    %v1161 = vrot.slane %v1157, %v1160
    %v1162 = vmul.f32 %v1156, %v1161
    %v1163 = vld [vmem:[%s9 + $0xd] sm:$0x1]
    %v1164 = vlaneseq
    %v1165 = vshrl.u32 %v1164, 7
    %v1166 = vsub.s32 0, %v1165
    %v1167 = vrot.slane %v1163, %v1166
    %v1168 = vadd.f32 %v1162, %v1167
    %v1169 = vld [vmem:[%s8] sm:$0xf]
    %v1170 = vld [vmem:[%s8 + $0x4] sm:$0xf]
    %v1171 = vld [vmem:[%s8 + $0x8] sm:$0xf]
    %v1172 = vld [vmem:[%s8 + $0xc] sm:$0xf]
    %v1173 = vpack.c.bf16 %v1168, %v1168
    %v1174 = vld [vmem:[%s9 + $0x10] sm:$0x1]
    %v1175 = vlaneseq
    %v1176 = vshrl.u32 %v1175, 7
    %v1177 = vsub.s32 0, %v1176
    %v1178 = vrot.slane %v1174, %v1177
    %v1183 = vunpack.c.l.b16 %v1169
    %v1184 = vunpack.c.l.b16 %v1170
    %v1185 = vunpack.c.l.b16 %v1171
    %v1186 = vunpack.c.l.b16 %v1172
    %v1187 = vpack.c.b16 %v1184, %v1183
    %v1188 = vpack.c.b16 %v1186, %v1185
    %v1192 = vsel %vm136, %v1173, 0
    %1194 = vmatprep.subr.bf16.mxu0 0
    %1195 = vmatpush1.bf16.msra.mxu0 %v1187
    %1196 = vmatprep.subr.bf16.mxu0 0
    %1197 = vmatpush1.bf16.msra.mxu0 %v1188
    %1198 = vmatprep.subr.bf16.mxu0 0
    %1199 = vmatpush1.bf16.msra.mxu0 0
    %1200 = vmatprep.subr.bf16.mxu0 0
    %1201 = vmatpush1.bf16.msra.mxu0 0
    %1202 = vmatprep.subr.bf16.mxu0 0
    %1203 = vmatpush1.bf16.msra.mxu0 0
    %1204 = vmatprep.subr.bf16.mxu0 0
    %1205 = vmatpush1.bf16.msra.mxu0 0
    %1206 = vmatprep.subr.bf16.mxu0 0
    %1207 = vmatpush1.bf16.msra.mxu0 0
    %1208 = vmatprep.subr.bf16.mxu0 0
    %1209 = vmatpush1.bf16.msra.mxu0 0
    %1210 = vmatprep.subr.bf16.mxu0 0
    %1211 = vmatpush1.bf16.msra.mxu0 0
    %1212 = vmatprep.subr.bf16.mxu0 0
    %1213 = vmatpush1.bf16.msra.mxu0 0
    %1214 = vmatprep.subr.bf16.mxu0 0
    %1215 = vmatpush1.bf16.msra.mxu0 0
    %1216 = vmatprep.subr.bf16.mxu0 0
    %1217 = vmatpush1.bf16.msra.mxu0 0
    %1218 = vmatprep.subr.bf16.mxu0 0
    %1219 = vmatpush1.bf16.msra.mxu0 0
    %1220 = vmatprep.subr.bf16.mxu0 0
    %1221 = vmatpush1.bf16.msra.mxu0 0
    %1222 = vmatprep.subr.bf16.mxu0 0
    %1223 = vmatpush1.bf16.msra.mxu0 0
    %1224 = vmatprep.subr.bf16.mxu0 0
    %1225 = vmatpush1.bf16.msra.mxu0 0
    %1226 = vmatprep.mubr.bf16.mxu0 0
    %1227 = vmatmul.mubr.bf16.gmra.mrb[0].mxu0 %v1192
    %v1228 = vpop.f32.mrb[0].mxu0
    %v1229 = vadd.f32 %v1178, %v1228
    %v1230 = vpop.f32.mrb[0].mxu0
    %v1231 = vpop.f32.mrb[0].mxu0
    %v1232 = vpop.f32.mrb[0].mxu0
    %1233 = vdwg.mxu0
    %vm1234 = vcmask 58368
    %1235 = vst.msk [vmem:[#allocation2] sm:$0x3] %vm1234, %v1229
    // Predicated region
    $region42: #{mcsnet_forward.1} parent=1 // pred_check
      _
    $region43: #{mcsnet_forward.1} parent=1 // pred_check_branch
      %1237 = sbr.rel (0) target = $region45
    $region44: #{mcsnet_forward.1} parent=1 // pred_region
      %s1239 = ssub.s32 32, 32
      %1240 = vsyncadd [#allocation3], %s1239
      %s1242 = sshll.u32 [#allocation2], 4
      %s1243 = int_to_ptr.vmem [resolvable:$true] %s1242
      %1245 = dma.vmem_to_hbm [thread:$0]  %s1243, 32, %s10, [#allocation3]
    $region45: #{mcsnet_forward.1} parent=1 // pred_fallthru
      _
    // Predicated region
    $region46: #{mcsnet_forward.1} parent=1 // pred_check
      _
    $region47: #{mcsnet_forward.1} parent=1 // pred_check_branch
      %1247 = sbr.rel (0) target = $region49
    $region48: #{mcsnet_forward.1} parent=1 // pred_region
      %1248 = dma.done [#allocation3], 32
    $region49: #{mcsnet_forward.1} parent=1 // pred_fallthru
      _
    %1249 = vsyncpa [#allocation3], 1

</llo_original>
